<compile_context>
chip_gen: v5e
topology: v5e:2x2
jax: 0.10.0
libtpu: 0.0.40
codegen_flags: <defaults>
</compile_context>

<pallas_src>
import jax
import jax.numpy as jnp
from jax.experimental import pallas as pl
from jax.experimental.pallas import tpu as pltpu

KSIZE = 7
PAD = 3


def _dconv7_kernel(x_ref, m_ref, b_ref, o_ref, pad_ref):
    """One row-tile of the lane-packed depthwise conv.

    x_ref  : (H, L)      VMEM  packed input slab, L = N*C*W (lanes)
    m_ref  : (7, L, L)   VMEM  per-ki block-diagonal tap matrices
    b_ref  : (1, L)      VMEM  per-lane bias vector
    o_ref  : (Th, L)     VMEM  output rows [i*Th, (i+1)*Th)
    pad_ref: (H+6, L)    VMEM  scratch: vertically reflect-padded slab (f32)
    """
    H, _ = x_ref.shape
    Th = o_ref.shape[0]

    # ---- vertical reflect halo: full-lane-width row stores only -------------
    # Horizontal reflect + weights live inside m_ref, so there are no narrow
    # column copies and no stale lanes anywhere.  Rebuilt every grid step:
    # steps may land on different TensorCores ("parallel" axis), so scratch
    # state cannot be assumed shared across steps (cost: 7 cheap wide stores).
    pad_ref[PAD:PAD + H, :] = x_ref[...].astype(jnp.float32)
    for d in range(1, PAD + 1):
        pad_ref[PAD - d:PAD - d + 1, :] = (
            x_ref[d:d + 1, :].astype(jnp.float32))                     # top
        pad_ref[PAD + H - 1 + d:PAD + H + d, :] = (
            x_ref[H - 1 - d:H - d, :].astype(jnp.float32))             # bottom

    # ---- 7 vertical taps on the MXU; bias folded into the first tap ---------
    # Per tap: one native sublane-offset vld from pad_ref + one (Th,L)x(L,L)
    # matmul.  No lane-offset loads, no rolls, no masked stores.
    r0 = pl.multiple_of(pl.program_id(0) * Th, Th)
    acc = jnp.dot(pad_ref[pl.ds(r0, Th), :], m_ref[0],
                  preferred_element_type=jnp.float32,
                  precision=jax.lax.Precision.HIGHEST) + b_ref[...]
    for ki in range(1, KSIZE):
        acc = acc + jnp.dot(pad_ref[pl.ds(r0 + ki, Th), :], m_ref[ki],
                            preferred_element_type=jnp.float32,
                            precision=jax.lax.Precision.HIGHEST)
    o_ref[...] = acc.astype(o_ref.dtype)


def _reflect_index(idx, size):
    """PyTorch 'reflect' index map for idx in [-PAD, size+PAD)."""
    idx = jnp.where(idx < 0, -idx, idx)
    idx = jnp.where(idx >= size, 2 * (size - 1) - idx, idx)
    return idx


def _build_tap_matrices(weight, n, c, w):
    """M[ki] is block-diagonal over the N*C packed planes; each (W, W) block
    folds the 7 horizontal taps, horizontal reflect padding and that channel's
    weights, so out_rows(ki) = pad_rows(ki) @ M[ki].  O(C*W^2*K) weight
    transform, done once per call on the host-side XLA graph."""
    cols = jnp.arange(w)
    rows = jnp.arange(w)
    a = jnp.zeros((c, KSIZE, w, w), jnp.float32)          # (chan, ki, wi, wo)
    for kj in range(KSIZE):
        src = _reflect_index(cols + kj - PAD, w)                        # (wo,)
        onehot = (rows[:, None] == src[None, :]).astype(jnp.float32)    # (wi, wo)
        a = a + weight[:, :, kj].astype(jnp.float32)[:, :, None, None] * onehot
    num_lanes = n * c * w
    m = jnp.zeros((KSIZE, num_lanes, num_lanes), jnp.float32)
    for p in range(n * c):                                # plane p = n_idx*C + c_idx
        ch = p % c
        m = m.at[:, p * w:(p + 1) * w, p * w:(p + 1) * w].set(a[ch])
    return m


def dconv7(x, weight, bias, num_tiles=None):
    """Depthwise 7x7 conv, padding=3, reflect padding, groups=C.

    x:      (N, C, H, W)  float32
    weight: (C, 7, 7)     float32   (PyTorch weight (C, 1, 7, 7), squeezed)
    bias:   (C,)          float32
    returns (N, C, H, W)  float32
    """
    n, c, h, w = x.shape
    assert weight.shape == (c, KSIZE, KSIZE) and bias.shape == (c,)
    assert h >= PAD + 1 and w >= PAD + 1, "reflect padding needs H, W >= 4"

    lanes = n * c * w
    # Pack N*C planes onto the lane axis (pure layout plumbing).
    x_slab = jnp.transpose(x, (2, 0, 1, 3)).reshape(h, lanes).astype(jnp.float32)
    m = _build_tap_matrices(weight, n, c, w)
    bvec = jnp.tile(jnp.repeat(bias.astype(jnp.float32), w), n).reshape(1, lanes)

    # Two "parallel" row-tiles so v7x's 2 TensorCores both get work; v5e/v6e
    # (1 TC) pay one extra ~0.35us step.  Tile rows must stay a multiple of 8.
    if num_tiles is None:
        num_tiles = 2 if h % 16 == 0 else 1
    th = h // num_tiles
    hp = h + 2 * PAD

    # VMEM budget from actual buffer sizes (double-buffered ins/outs + scratch).
    vmem_bytes = 4 * (2 * (h * lanes + KSIZE * lanes * lanes + lanes)
                      + 2 * th * lanes + hp * lanes)
    vmem_limit = min(128 * 1024 * 1024, max(2 * vmem_bytes, 32 * 1024 * 1024))

    out_slab = pl.pallas_call(
        _dconv7_kernel,
        out_shape=jax.ShapeDtypeStruct((h, lanes), x.dtype),
        grid_spec=pltpu.PrefetchScalarGridSpec(
            num_scalar_prefetch=0,
            grid=(num_tiles,),
            in_specs=[
                pl.BlockSpec((h, lanes), lambda i: (0, 0)),             # input slab
                pl.BlockSpec((KSIZE, lanes, lanes), lambda i: (0, 0, 0)),  # taps
                pl.BlockSpec((1, lanes), lambda i: (0, 0)),             # bias lanes
            ],
            out_specs=pl.BlockSpec((th, lanes), lambda i: (i, 0)),
            scratch_shapes=[pltpu.VMEM((hp, lanes), jnp.float32)],
        ),
        compiler_params=pltpu.CompilerParams(
            dimension_semantics=("parallel",),
            vmem_limit_bytes=vmem_limit,
        ),
    )(x_slab, m, bvec)

    # Unpack lanes back to NCHW (layout plumbing).
    return out_slab.reshape(h, n, c, w).transpose(1, 2, 0, 3).astype(x.dtype)


def _reference(x, weight, bias):
    """Pure-JAX reference (lax depthwise conv on reflect-padded input)."""
    n_, c_, _, _ = x.shape
    xp = jnp.pad(x, ((0, 0), (0, 0), (PAD, PAD), (PAD, PAD)), mode="reflect")
    w = weight[:, None, :, :]  # (C, 1, 7, 7) == (O, I/groups, kh, kw)
    out = jax.lax.conv_general_dilated(
        xp, w,
        window_strides=(1, 1),
        padding="VALID",
        dimension_numbers=("NCHW", "OIHW", "NCHW"),
        feature_group_count=c_,
        precision=jax.lax.Precision.HIGHEST,
    )
    return out + bias[None, :, None, None]


if __name__ == "__main__":
    key = jax.random.PRNGKey(0)
    kx, kw, kb = jax.random.split(key, 3)

    N, C, H, W = 2, 4, 16, 16  # f_number = C = 4
    x = jax.random.normal(kx, (N, C, H, W), dtype=jnp.float32)
    # Shapes as in nn.Conv2d(C, C, 7, padding=3, groups=C).
    weight = jax.random.normal(kw, (C, KSIZE, KSIZE), dtype=jnp.float32) * 0.05
    bias = jax.random.normal(kb, (C,), dtype=jnp.float32) * 0.1

    out = jax.block_until_ready(dconv7(x, weight, bias))
    ref = jax.block_until_ready(_reference(x, weight, bias))

    assert out.shape == (N, C, H, W)
    assert jnp.allclose(out, ref, atol=1e-4, rtol=1e-4), "mismatch vs reference"

    print("KERNEL_OK")
</pallas_src>

<mosaic_0001>
module attributes {stable_mosaic.version = 11 : i64} {
  func.func @_dconv7_kernel(%arg0: i32, %arg1: memref<16x128xf32, #tpu.memory_space<vmem>>, %arg2: memref<7x128x128xf32, #tpu.memory_space<vmem>>, %arg3: memref<1x128xf32, #tpu.memory_space<vmem>>, %arg4: memref<8x128xf32, #tpu.memory_space<vmem>>, %arg5: memref<22x128xf32, #tpu.memory_space<vmem>>) attributes {dimension_semantics = [#tpu.dimension_semantics<parallel>], iteration_bounds = array<i64: 2>, scalar_prefetch = 0 : i64, scratch_operands = 1 : i64, tpu.core_type = #tpu.core_type<tc>, window_params = [{pipeline_mode = #tpu.pipeline_mode<synchronous>, transform_indices = @transform_0, window_bounds = array<i64: 16, 128>}, {pipeline_mode = #tpu.pipeline_mode<synchronous>, transform_indices = @transform_1, window_bounds = array<i64: 7, 128, 128>}, {pipeline_mode = #tpu.pipeline_mode<synchronous>, transform_indices = @transform_2, window_bounds = array<i64: 1, 128>}, {transform_indices = @transform_3, window_bounds = array<i64: 8, 128>}]} {
    %c0 = arith.constant 0 : index
    %c0_0 = arith.constant 0 : index
    %0 = vector.load %arg1[%c0, %c0_0] : memref<16x128xf32, #tpu.memory_space<vmem>>, vector<16x128xf32>
    %c3 = arith.constant 3 : index
    %c0_1 = arith.constant 0 : index
    %1 = vector.load %arg5[%c3, %c0_1] : memref<22x128xf32, #tpu.memory_space<vmem>>, vector<16x128xf32>
    tpu.vector_store %arg5[%c3, %c0_1], %0 {strides = array<i32>} : memref<22x128xf32, #tpu.memory_space<vmem>>, vector<16x128xf32>,
    %c1 = arith.constant 1 : index
    %c0_2 = arith.constant 0 : index
    %2 = vector.load %arg1[%c1, %c0_2] : memref<16x128xf32, #tpu.memory_space<vmem>>, vector<1x128xf32>
    %c2 = arith.constant 2 : index
    %c0_3 = arith.constant 0 : index
    %3 = vector.load %arg5[%c2, %c0_3] : memref<22x128xf32, #tpu.memory_space<vmem>>, vector<1x128xf32>
    tpu.vector_store %arg5[%c2, %c0_3], %2 {strides = array<i32>} : memref<22x128xf32, #tpu.memory_space<vmem>>, vector<1x128xf32>,
    %c14 = arith.constant 14 : index
    %c0_4 = arith.constant 0 : index
    %4 = vector.load %arg1[%c14, %c0_4] : memref<16x128xf32, #tpu.memory_space<vmem>>, vector<1x128xf32>
    %c19 = arith.constant 19 : index
    %c0_5 = arith.constant 0 : index
    %5 = vector.load %arg5[%c19, %c0_5] : memref<22x128xf32, #tpu.memory_space<vmem>>, vector<1x128xf32>
    tpu.vector_store %arg5[%c19, %c0_5], %4 {strides = array<i32>} : memref<22x128xf32, #tpu.memory_space<vmem>>, vector<1x128xf32>,
    %c2_6 = arith.constant 2 : index
    %c0_7 = arith.constant 0 : index
    %6 = vector.load %arg1[%c2_6, %c0_7] : memref<16x128xf32, #tpu.memory_space<vmem>>, vector<1x128xf32>
    %c1_8 = arith.constant 1 : index
    %c0_9 = arith.constant 0 : index
    %7 = vector.load %arg5[%c1_8, %c0_9] : memref<22x128xf32, #tpu.memory_space<vmem>>, vector<1x128xf32>
    tpu.vector_store %arg5[%c1_8, %c0_9], %6 {strides = array<i32>} : memref<22x128xf32, #tpu.memory_space<vmem>>, vector<1x128xf32>,
    %c13 = arith.constant 13 : index
    %c0_10 = arith.constant 0 : index
    %8 = vector.load %arg1[%c13, %c0_10] : memref<16x128xf32, #tpu.memory_space<vmem>>, vector<1x128xf32>
    %c20 = arith.constant 20 : index
    %c0_11 = arith.constant 0 : index
    %9 = vector.load %arg5[%c20, %c0_11] : memref<22x128xf32, #tpu.memory_space<vmem>>, vector<1x128xf32>
    tpu.vector_store %arg5[%c20, %c0_11], %8 {strides = array<i32>} : memref<22x128xf32, #tpu.memory_space<vmem>>, vector<1x128xf32>,
    %c3_12 = arith.constant 3 : index
    %c0_13 = arith.constant 0 : index
    %10 = vector.load %arg1[%c3_12, %c0_13] : memref<16x128xf32, #tpu.memory_space<vmem>>, vector<1x128xf32>
    %c0_14 = arith.constant 0 : index
    %c0_15 = arith.constant 0 : index
    %11 = vector.load %arg5[%c0_14, %c0_15] : memref<22x128xf32, #tpu.memory_space<vmem>>, vector<1x128xf32>
    tpu.vector_store %arg5[%c0_14, %c0_15], %10 {strides = array<i32>} : memref<22x128xf32, #tpu.memory_space<vmem>>, vector<1x128xf32>,
    %c12 = arith.constant 12 : index
    %c0_16 = arith.constant 0 : index
    %12 = vector.load %arg1[%c12, %c0_16] : memref<16x128xf32, #tpu.memory_space<vmem>>, vector<1x128xf32>
    %c21 = arith.constant 21 : index
    %c0_17 = arith.constant 0 : index
    %13 = vector.load %arg5[%c21, %c0_17] : memref<22x128xf32, #tpu.memory_space<vmem>>, vector<1x128xf32>
    tpu.vector_store %arg5[%c21, %c0_17], %12 {strides = array<i32>} : memref<22x128xf32, #tpu.memory_space<vmem>>, vector<1x128xf32>,
    %c8_i32 = arith.constant 8 : i32
    %14 = arith.muli %arg0, %c8_i32 : i32
    %15 = tpu.assume_multiple %14, 8 : i32
    %16 = arith.index_cast %15 : i32 to index
    %c0_18 = arith.constant 0 : index
    %17 = vector.load %arg5[%16, %c0_18] : memref<22x128xf32, #tpu.memory_space<vmem>>, vector<8x128xf32>
    %c0_19 = arith.constant 0 : index
    %c0_20 = arith.constant 0 : index
    %c0_21 = arith.constant 0 : index
    %18 = vector.load %arg2[%c0_19, %c0_20, %c0_21] : memref<7x128x128xf32, #tpu.memory_space<vmem>>, vector<1x128x128xf32>
    %19 = vector.shape_cast %18 : vector<1x128x128xf32> to vector<128x128xf32>
    %cst = arith.constant dense<0.000000e+00> : vector<8x128xf32>
    %20 = tpu.matmul %17, %19, %cst {dimension_numbers = #tpu.dot_dimension_numbers<[1], [0], [0], [1], [0, 0, 1, 1], [], []>, precision = #tpu.contract_precision<fp32>} : vector<8x128xf32>, vector<128x128xf32>, vector<8x128xf32> -> vector<8x128xf32>
    %c0_22 = arith.constant 0 : index
    %c0_23 = arith.constant 0 : index
    %21 = vector.load %arg3[%c0_22, %c0_23] : memref<1x128xf32, #tpu.memory_space<vmem>>, vector<1x128xf32>
    %22 = vector.broadcast %21 : vector<1x128xf32> to vector<8x128xf32>
    %23 = arith.addf %20, %22 : vector<8x128xf32>
    %c1_i32 = arith.constant 1 : i32
    %24 = arith.addi %15, %c1_i32 : i32
    %25 = arith.index_cast %24 : i32 to index
    %c0_24 = arith.constant 0 : index
    %26 = vector.load %arg5[%25, %c0_24] : memref<22x128xf32, #tpu.memory_space<vmem>>, vector<8x128xf32>
    %c1_25 = arith.constant 1 : index
    %c0_26 = arith.constant 0 : index
    %c0_27 = arith.constant 0 : index
    %27 = vector.load %arg2[%c1_25, %c0_26, %c0_27] : memref<7x128x128xf32, #tpu.memory_space<vmem>>, vector<1x128x128xf32>
    %28 = vector.shape_cast %27 : vector<1x128x128xf32> to vector<128x128xf32>
    %cst_28 = arith.constant dense<0.000000e+00> : vector<8x128xf32>
    %29 = tpu.matmul %26, %28, %cst_28 {dimension_numbers = #tpu.dot_dimension_numbers<[1], [0], [0], [1], [0, 0, 1, 1], [], []>, precision = #tpu.contract_precision<fp32>} : vector<8x128xf32>, vector<128x128xf32>, vector<8x128xf32> -> vector<8x128xf32>
    %30 = arith.addf %23, %29 : vector<8x128xf32>
    %c2_i32 = arith.constant 2 : i32
    %31 = arith.addi %15, %c2_i32 : i32
    %32 = arith.index_cast %31 : i32 to index
    %c0_29 = arith.constant 0 : index
    %33 = vector.load %arg5[%32, %c0_29] : memref<22x128xf32, #tpu.memory_space<vmem>>, vector<8x128xf32>
    %c2_30 = arith.constant 2 : index
    %c0_31 = arith.constant 0 : index
    %c0_32 = arith.constant 0 : index
    %34 = vector.load %arg2[%c2_30, %c0_31, %c0_32] : memref<7x128x128xf32, #tpu.memory_space<vmem>>, vector<1x128x128xf32>
    %35 = vector.shape_cast %34 : vector<1x128x128xf32> to vector<128x128xf32>
    %cst_33 = arith.constant dense<0.000000e+00> : vector<8x128xf32>
    %36 = tpu.matmul %33, %35, %cst_33 {dimension_numbers = #tpu.dot_dimension_numbers<[1], [0], [0], [1], [0, 0, 1, 1], [], []>, precision = #tpu.contract_precision<fp32>} : vector<8x128xf32>, vector<128x128xf32>, vector<8x128xf32> -> vector<8x128xf32>
    %37 = arith.addf %30, %36 : vector<8x128xf32>
    %c3_i32 = arith.constant 3 : i32
    %38 = arith.addi %15, %c3_i32 : i32
    %39 = arith.index_cast %38 : i32 to index
    %c0_34 = arith.constant 0 : index
    %40 = vector.load %arg5[%39, %c0_34] : memref<22x128xf32, #tpu.memory_space<vmem>>, vector<8x128xf32>
    %c3_35 = arith.constant 3 : index
    %c0_36 = arith.constant 0 : index
    %c0_37 = arith.constant 0 : index
    %41 = vector.load %arg2[%c3_35, %c0_36, %c0_37] : memref<7x128x128xf32, #tpu.memory_space<vmem>>, vector<1x128x128xf32>
    %42 = vector.shape_cast %41 : vector<1x128x128xf32> to vector<128x128xf32>
    %cst_38 = arith.constant dense<0.000000e+00> : vector<8x128xf32>
    %43 = tpu.matmul %40, %42, %cst_38 {dimension_numbers = #tpu.dot_dimension_numbers<[1], [0], [0], [1], [0, 0, 1, 1], [], []>, precision = #tpu.contract_precision<fp32>} : vector<8x128xf32>, vector<128x128xf32>, vector<8x128xf32> -> vector<8x128xf32>
    %44 = arith.addf %37, %43 : vector<8x128xf32>
    %c4_i32 = arith.constant 4 : i32
    %45 = arith.addi %15, %c4_i32 : i32
    %46 = arith.index_cast %45 : i32 to index
    %c0_39 = arith.constant 0 : index
    %47 = vector.load %arg5[%46, %c0_39] : memref<22x128xf32, #tpu.memory_space<vmem>>, vector<8x128xf32>
    %c4 = arith.constant 4 : index
    %c0_40 = arith.constant 0 : index
    %c0_41 = arith.constant 0 : index
    %48 = vector.load %arg2[%c4, %c0_40, %c0_41] : memref<7x128x128xf32, #tpu.memory_space<vmem>>, vector<1x128x128xf32>
    %49 = vector.shape_cast %48 : vector<1x128x128xf32> to vector<128x128xf32>
    %cst_42 = arith.constant dense<0.000000e+00> : vector<8x128xf32>
    %50 = tpu.matmul %47, %49, %cst_42 {dimension_numbers = #tpu.dot_dimension_numbers<[1], [0], [0], [1], [0, 0, 1, 1], [], []>, precision = #tpu.contract_precision<fp32>} : vector<8x128xf32>, vector<128x128xf32>, vector<8x128xf32> -> vector<8x128xf32>
    %51 = arith.addf %44, %50 : vector<8x128xf32>
    %c5_i32 = arith.constant 5 : i32
    %52 = arith.addi %15, %c5_i32 : i32
    %53 = arith.index_cast %52 : i32 to index
    %c0_43 = arith.constant 0 : index
    %54 = vector.load %arg5[%53, %c0_43] : memref<22x128xf32, #tpu.memory_space<vmem>>, vector<8x128xf32>
    %c5 = arith.constant 5 : index
    %c0_44 = arith.constant 0 : index
    %c0_45 = arith.constant 0 : index
    %55 = vector.load %arg2[%c5, %c0_44, %c0_45] : memref<7x128x128xf32, #tpu.memory_space<vmem>>, vector<1x128x128xf32>
    %56 = vector.shape_cast %55 : vector<1x128x128xf32> to vector<128x128xf32>
    %cst_46 = arith.constant dense<0.000000e+00> : vector<8x128xf32>
    %57 = tpu.matmul %54, %56, %cst_46 {dimension_numbers = #tpu.dot_dimension_numbers<[1], [0], [0], [1], [0, 0, 1, 1], [], []>, precision = #tpu.contract_precision<fp32>} : vector<8x128xf32>, vector<128x128xf32>, vector<8x128xf32> -> vector<8x128xf32>
    %58 = arith.addf %51, %57 : vector<8x128xf32>
    %c6_i32 = arith.constant 6 : i32
    %59 = arith.addi %15, %c6_i32 : i32
    %60 = arith.index_cast %59 : i32 to index
    %c0_47 = arith.constant 0 : index
    %61 = vector.load %arg5[%60, %c0_47] : memref<22x128xf32, #tpu.memory_space<vmem>>, vector<8x128xf32>
    %c6 = arith.constant 6 : index
    %c0_48 = arith.constant 0 : index
    %c0_49 = arith.constant 0 : index
    %62 = vector.load %arg2[%c6, %c0_48, %c0_49] : memref<7x128x128xf32, #tpu.memory_space<vmem>>, vector<1x128x128xf32>
    %63 = vector.shape_cast %62 : vector<1x128x128xf32> to vector<128x128xf32>
    %cst_50 = arith.constant dense<0.000000e+00> : vector<8x128xf32>
    %64 = tpu.matmul %61, %63, %cst_50 {dimension_numbers = #tpu.dot_dimension_numbers<[1], [0], [0], [1], [0, 0, 1, 1], [], []>, precision = #tpu.contract_precision<fp32>} : vector<8x128xf32>, vector<128x128xf32>, vector<8x128xf32> -> vector<8x128xf32>
    %65 = arith.addf %58, %64 : vector<8x128xf32>
    %c0_51 = arith.constant 0 : index
    %c0_52 = arith.constant 0 : index
    %66 = vector.load %arg4[%c0_51, %c0_52] : memref<8x128xf32, #tpu.memory_space<vmem>>, vector<8x128xf32>
    tpu.vector_store %arg4[%c0_51, %c0_52], %65 {strides = array<i32>} : memref<8x128xf32, #tpu.memory_space<vmem>>, vector<8x128xf32>,
    return
  }
  func.func @transform_0(%arg0: i32) -> (i32, i32) {
    %c0_i32 = arith.constant 0 : i32
    %c0_i32_0 = arith.constant 0 : i32
    %c0_i32_1 = arith.constant 0 : i32
    return %c0_i32, %c0_i32_0 : i32, i32
  }
  func.func @transform_1(%arg0: i32) -> (i32, i32, i32) {
    %c0_i32 = arith.constant 0 : i32
    %c0_i32_0 = arith.constant 0 : i32
    %c0_i32_1 = arith.constant 0 : i32
    %c0_i32_2 = arith.constant 0 : i32
    return %c0_i32, %c0_i32_0, %c0_i32_1 : i32, i32, i32
  }
  func.func @transform_2(%arg0: i32) -> (i32, i32) {
    %c0_i32 = arith.constant 0 : i32
    %c0_i32_0 = arith.constant 0 : i32
    %c0_i32_1 = arith.constant 0 : i32
    return %c0_i32, %c0_i32_0 : i32, i32
  }
  func.func @transform_3(%arg0: i32) -> (i32, i32) {
    %c0_i32 = arith.constant 0 : i32
    %c0_i32_0 = arith.constant 0 : i32
    return %arg0, %c0_i32 : i32, i32
  }
}

</mosaic_0001>

<llo_original>
// kernel: tpu_custom_call.1
$region0: #{tpu_custom_call.1}
  #allocation0 [shape = 'u32[]', space=smem, size = 0x4, offset = 0x4, fixed_abs, tag = 'smem constant byte address 0x4 - core index']
  #allocation1 [shape = 'u32[72,128]{1,0:T(1,128)}', space=vmem, size = 0x9000, scoped, tag = 'internal scratch']
  #allocation2 [shape = 'f32[22,128]{1,0:T(8,128)}', space=vmem, size = 0x3000, scoped, tag = 'scratch operand']
  %s0 = inlined_call_operand.hbm [shape: f32[16,128], index: 0, kind: input, shape index: {}]
  %s1 = inlined_call_operand.hbm [shape: f32[7,128,128], index: 1, kind: input, shape index: {}]
  %s2 = inlined_call_operand.vmem [shape: f32[1,128], index: 2, kind: input, shape index: {}]
  %s3 = inlined_call_operand.hbm [shape: f32[16,128], index: 3, kind: output, shape index: {}]
  %s4 = sld [smem:[#allocation0]]
  $region53: #{tpu_custom_call.1} parent=0
    _
  %s6 = ssub.s32 1, %s4
  %s7 = scalar_select 0, %s6, %s4
  $region1: #{tpu_custom_call.1} parent=0
    #allocation3 [shape = 'u8[8192]{0}', space=vmem, size = 0x2000, scoped, tag = 'input window, operand 0, single buffered']
    #allocation4 [shape = 's32[2]{0}', space=sflag, size = 0x8, scoped, tag = 'scoped memory for tpu_custom_call.1']
    #allocation5 [shape = 's32[2]{0}', space=sflag, size = 0x8, scoped, tag = 'scoped memory for tpu_custom_call.1']
    #allocation6 [shape = 'u8[458752]{0}', space=vmem, size = 0x70000, scoped, tag = 'input window, operand 1, single buffered']
    #allocation7 [shape = 's32[1]{0}', space=sflag, size = 0x4, scoped, tag = 'scoped memory for tpu_custom_call.1']
    #allocation8 [shape = 'u8[8192]{0}', space=vmem, size = 0x2000, scoped, tag = 'output window, operand 0']
    %8 = vsyncpa [#allocation4], 0
    %9 = vsyncpa [#allocation7], 0
    %10 = vsyncpa [#allocation5], 0
    %s11 = scalar_lea.sflag [#allocation5], 1
    %12 = vsyncpa %s11, 0
    loop: start=0, step=1, limit=4
    $region2: #{tpu_custom_call.1} parent=1 // loop_pre_header
      _
    $region3: #{tpu_custom_call.1} parent=1 // loop_header
      %s14 = sphi 0, %s18
      %p15 = scmp.ge.s32.totalorder %s14, 4
      %s22 = sphi 0, %s22
      %s24 = sphi 0, %s22
      %s25 = sphi 0, %s24
      %s39 = sphi 0, %s25
      %s43 = sphi 0, %s43
      %s45 = sphi 0, %s43
      %s46 = sphi 0, %s45
      %s60 = sphi 0, %s46
      %s64 = sphi 0, %s64
      %s66 = sphi 0, %s64
      %s67 = sphi 0, %s66
      %s81 = sphi 0, %s67
      %s87 = sphi 0, %s89
      %s90 = sphi 0, %s87
      %s91 = sphi 0, %s90
      %s107 = sphi 0, %s91
    $region4: #{tpu_custom_call.1} parent=1 // loop_header_branch
      %17 = sbr.rel (%p15) target = $region8
    $region5: #{tpu_custom_call.1} parent=1 // loop_body
      %s19 = ssub.s32 %s14, 1
      %s20 = ssub.s32 %s14, 2
      %s21 = sadd.s32 %s14, 1
      %s23 = sadd.s32 %s22, 1
      %p26 = scmp.eq.s32.totalorder %s14, 1
      %p27 = scmp.ne.s32.totalorder %s22, %s24
      %p28 = scmp.eq.s32.totalorder %s14, 0
      %p29 = por %p27, %p28
      %p30 = scmp.ne.s32.totalorder %s22, %s24
      %p31 = scmp.eq.s32.totalorder %s19, 1
      %p32 = por %p30, %p31
      %p33 = scmp.ne.s32.totalorder %s24, %s25
      %p34 = scmp.eq.s32.totalorder %s19, 0
      %p35 = por %p33, %p34
      %p36 = scmp.ne.s32.totalorder %s24, %s25
      %p37 = scmp.eq.s32.totalorder %s20, 1
      %p38 = por %p36, %p37
      %p40 = scmp.ne.s32.totalorder %s25, %s39
      %p41 = scmp.eq.s32.totalorder %s20, 0
      %p42 = por %p40, %p41
      %s44 = sadd.s32 %s43, 1
      %p47 = scmp.eq.s32.totalorder %s14, 1
      %p48 = scmp.ne.s32.totalorder %s43, %s45
      %p49 = scmp.eq.s32.totalorder %s14, 0
      %p50 = por %p48, %p49
      %p51 = scmp.ne.s32.totalorder %s43, %s45
      %p52 = scmp.eq.s32.totalorder %s19, 1
      %p53 = por %p51, %p52
      %p54 = scmp.ne.s32.totalorder %s45, %s46
      %p55 = scmp.eq.s32.totalorder %s19, 0
      %p56 = por %p54, %p55
      %p57 = scmp.ne.s32.totalorder %s45, %s46
      %p58 = scmp.eq.s32.totalorder %s20, 1
      %p59 = por %p57, %p58
      %p61 = scmp.ne.s32.totalorder %s46, %s60
      %p62 = scmp.eq.s32.totalorder %s20, 0
      %p63 = por %p61, %p62
      %s65 = sadd.s32 %s64, 1
      %p68 = scmp.eq.s32.totalorder %s14, 1
      %p69 = scmp.ne.s32.totalorder %s64, %s66
      %p70 = scmp.eq.s32.totalorder %s14, 0
      %p71 = por %p69, %p70
      %p72 = scmp.ne.s32.totalorder %s64, %s66
      %p73 = scmp.eq.s32.totalorder %s19, 1
      %p74 = por %p72, %p73
      %p75 = scmp.ne.s32.totalorder %s66, %s67
      %p76 = scmp.eq.s32.totalorder %s19, 0
      %p77 = por %p75, %p76
      %p78 = scmp.ne.s32.totalorder %s66, %s67
      %p79 = scmp.eq.s32.totalorder %s20, 1
      %p80 = por %p78, %p79
      %p82 = scmp.ne.s32.totalorder %s67, %s81
      %p83 = scmp.eq.s32.totalorder %s20, 0
      %p84 = por %p82, %p83
      %s85 = ssub.s32 %s14, %s21
      %p86 = scmp.eq.s32.totalorder %s85, 0
      %s88 = sadd.s32 %s87, 1
      %s89 = scalar_select %p86, %s87, %s88
      %p92 = pneg %p86
      %p93 = scmp.eq.s32.totalorder %s14, 1
      %p94 = por %p92, %p93
      %p95 = scmp.ne.s32.totalorder %s87, %s90
      %p96 = scmp.eq.s32.totalorder %s14, 0
      %p97 = por %p95, %p96
      %p98 = scmp.ne.s32.totalorder %s87, %s90
      %p99 = scmp.eq.s32.totalorder %s19, 1
      %p100 = por %p98, %p99
      %p101 = scmp.ne.s32.totalorder %s90, %s91
      %p102 = scmp.eq.s32.totalorder %s19, 0
      %p103 = por %p101, %p102
      %p104 = scmp.ne.s32.totalorder %s90, %s91
      %p105 = scmp.eq.s32.totalorder %s20, 1
      %p106 = por %p104, %p105
      %p108 = scmp.ne.s32.totalorder %s91, %s107
      %p109 = scmp.eq.s32.totalorder %s20, 0
      %p110 = por %p108, %p109
      %p111 = scmp.le.s32.totalorder 1, %s14
      %p112 = scmp.lt.s32.totalorder %s14, 3
      %p113 = pnand %p111, %p112
      %p114 = pneg %p113
      // Predicated region
      $region9: #{tpu_custom_call.1} parent=5 // pred_check
        _
      $region10: #{tpu_custom_call.1} parent=5 // pred_check_branch
        %116 = sbr.rel (%p113) target = $region12
      $region11: #{tpu_custom_call.1} parent=5 // pred_region
        %s117 = ssub.s32 %s14, 1
        // Predicated region
        $region13: #{tpu_custom_call.1} parent=11 // pred_check
          %p118 = pneg %p35
        $region14: #{tpu_custom_call.1} parent=11 // pred_check_branch
          %120 = sbr.rel (%p118) target = $region16
        $region15: #{tpu_custom_call.1} parent=11 // pred_region
          %122 = vsyncadd [#allocation4], 0
          %s123 = sshll.u32 %s0, 4
          %s124 = int_to_ptr.hbm [resolvable:$true] %s123
          %s125 = sshll.u32 [#allocation3], 4
          %s126 = int_to_ptr.vmem [resolvable:$true] %s125
          %131 = dma.hbm_to_vmem [thread:$0]  %s124, 256, %s126, [#allocation4], 128, 128, 8
        $region16: #{tpu_custom_call.1} parent=11 // pred_fallthru
          _
        // Predicated region
        $region17: #{tpu_custom_call.1} parent=11 // pred_check
          %p132 = pneg %p56
        $region18: #{tpu_custom_call.1} parent=11 // pred_check_branch
          %134 = sbr.rel (%p132) target = $region20
        $region19: #{tpu_custom_call.1} parent=11 // pred_region
          %136 = vsyncadd [#allocation7], 0
          %s137 = sshll.u32 %s1, 4
          %s138 = int_to_ptr.hbm [resolvable:$true] %s137
          %s139 = sshll.u32 [#allocation6], 4
          %s140 = int_to_ptr.vmem [resolvable:$true] %s139
          %145 = dma.hbm_to_vmem [thread:$0]  %s138, 14336, %s140, [#allocation7], 128, 128, 8
        $region20: #{tpu_custom_call.1} parent=11 // pred_fallthru
          _
        // Predicated region
        $region21: #{tpu_custom_call.1} parent=11 // pred_check
          %p146 = pneg %p77
        $region22: #{tpu_custom_call.1} parent=11 // pred_check_branch
          %148 = sbr.rel (%p146) target = $region24
        $region23: #{tpu_custom_call.1} parent=11 // pred_region
          _
        $region24: #{tpu_custom_call.1} parent=11 // pred_fallthru
          _
      $region12: #{tpu_custom_call.1} parent=5 // pred_fallthru
        _
      %p149 = scmp.lt.s32.totalorder %s14, 2
      // Predicated region
      $region25: #{tpu_custom_call.1} parent=5 // pred_check
        %p150 = pneg %p149
      $region26: #{tpu_custom_call.1} parent=5 // pred_check_branch
        %152 = sbr.rel (%p150) target = $region28
      $region27: #{tpu_custom_call.1} parent=5 // pred_region
        _
      $region28: #{tpu_custom_call.1} parent=5 // pred_fallthru
        _
      %p153 = scmp.le.s32.totalorder 1, %s14
      %p154 = scmp.lt.s32.totalorder %s14, 3
      %p155 = pnand %p153, %p154
      %p156 = pneg %p155
      // Predicated region
      $region29: #{tpu_custom_call.1} parent=5 // pred_check
        _
      $region30: #{tpu_custom_call.1} parent=5 // pred_check_branch
        %158 = sbr.rel (%p155) target = $region32
      $region31: #{tpu_custom_call.1} parent=5 // pred_region
        %s159 = ssub.s32 %s14, 1
        // Predicated region
        $region33: #{tpu_custom_call.1} parent=31 // pred_check
          %p160 = pneg %p35
        $region34: #{tpu_custom_call.1} parent=31 // pred_check_branch
          %162 = sbr.rel (%p160) target = $region36
        $region35: #{tpu_custom_call.1} parent=31 // pred_region
          %164 = dma.done [#allocation4], 256
        $region36: #{tpu_custom_call.1} parent=31 // pred_fallthru
          _
        // Predicated region
        $region37: #{tpu_custom_call.1} parent=31 // pred_check
          %p165 = pneg %p56
        $region38: #{tpu_custom_call.1} parent=31 // pred_check_branch
          %167 = sbr.rel (%p165) target = $region40
        $region39: #{tpu_custom_call.1} parent=31 // pred_region
          %169 = dma.done [#allocation7], 14336
        $region40: #{tpu_custom_call.1} parent=31 // pred_fallthru
          _
        %p170 = pneg %p35
        %p171 = pneg %p32
        %p172 = pneg %p56
        %p173 = pneg %p53
        %p174 = pneg %p77
        %p175 = pneg %p74
        %p176 = pneg %p103
        %p177 = pneg %p100
        %s178 = sand.u32 %s90, 1
        %s179 = scalar_lea.sflag [#allocation5], %s178
        %s180 = sand.u32 %s90, 1
        %s181 = smul.addr %s180, 8
        %s182 = scalar_lea.vmem [#allocation8], %s181
        %v183 = vld [vmem:[#allocation3] sm:$0xff]
        %v184 = vld [vmem:[#allocation3 + $0x8] sm:$0xff]
        %185 = vst [vmem:[#allocation2 + $0x3] sm:$0xff] %v183
        %186 = vst [vmem:[#allocation2 + $0xb] sm:$0xff] %v184
        %v187 = vld [vmem:[#allocation3 + $0x1] sm:$0x1]
        %188 = vst [vmem:[#allocation2 + $0x2] sm:$0x1] %v187
        %v189 = vld [vmem:[#allocation3 + $0xe] sm:$0x1]
        %190 = vst [vmem:[#allocation2 + $0x13] sm:$0x1] %v189
        %v191 = vld [vmem:[#allocation3 + $0x2] sm:$0x1]
        %192 = vst [vmem:[#allocation2 + $0x1] sm:$0x1] %v191
        %v193 = vld [vmem:[#allocation3 + $0xd] sm:$0x1]
        %194 = vst [vmem:[#allocation2 + $0x14] sm:$0x1] %v193
        %v195 = vld [vmem:[#allocation3 + $0x3] sm:$0x1]
        %196 = vst [vmem:[#allocation2] sm:$0x1] %v195
        %v197 = vld [vmem:[#allocation3 + $0xc] sm:$0x1]
        %198 = vst [vmem:[#allocation2 + $0x15] sm:$0x1] %v197
        %s199 = smul.u32 %s19, 8
        %s200 = scalar_lea.vmem [#allocation2], %s199
        %v201 = vld [vmem:[%s200] sm:$0xff]
        %v202 = vld [vmem:[#allocation6] sm:$0xff]
        %v203 = vld [vmem:[#allocation6 + $0x8] sm:$0xff]
        %v204 = vld [vmem:[#allocation6 + $0x10] sm:$0xff]
        %v205 = vld [vmem:[#allocation6 + $0x18] sm:$0xff]
        %v206 = vld [vmem:[#allocation6 + $0x20] sm:$0xff]
        %v207 = vld [vmem:[#allocation6 + $0x28] sm:$0xff]
        %v208 = vld [vmem:[#allocation6 + $0x30] sm:$0xff]
        %v209 = vld [vmem:[#allocation6 + $0x38] sm:$0xff]
        %v210 = vld [vmem:[#allocation6 + $0x40] sm:$0xff]
        %v211 = vld [vmem:[#allocation6 + $0x48] sm:$0xff]
        %v212 = vld [vmem:[#allocation6 + $0x50] sm:$0xff]
        %v213 = vld [vmem:[#allocation6 + $0x58] sm:$0xff]
        %v214 = vld [vmem:[#allocation6 + $0x60] sm:$0xff]
        %v215 = vld [vmem:[#allocation6 + $0x68] sm:$0xff]
        %v216 = vld [vmem:[#allocation6 + $0x70] sm:$0xff]
        %v217 = vld [vmem:[#allocation6 + $0x78] sm:$0xff]
        %v218 = vld [vmem:[%s2] sm:$0x1]
        %v220 = vperm.slane %v218, 0
        %v222 = vand.u32 %v217, 4294901760
        %223 = vmatpush.msra.mxu0 %v222
        %v224 = vand.u32 %v216, 4294901760
        %225 = vmatpush.msra.mxu0 %v224
        %v226 = vand.u32 %v215, 4294901760
        %227 = vmatpush.msra.mxu0 %v226
        %v228 = vand.u32 %v214, 4294901760
        %229 = vmatpush.msra.mxu0 %v228
        %v230 = vand.u32 %v213, 4294901760
        %231 = vmatpush.msra.mxu0 %v230
        %v232 = vand.u32 %v212, 4294901760
        %233 = vmatpush.msra.mxu0 %v232
        %v234 = vand.u32 %v211, 4294901760
        %235 = vmatpush.msra.mxu0 %v234
        %v236 = vand.u32 %v210, 4294901760
        %237 = vmatpush.msra.mxu0 %v236
        %v238 = vand.u32 %v209, 4294901760
        %239 = vmatpush.msra.mxu0 %v238
        %v240 = vand.u32 %v208, 4294901760
        %241 = vmatpush.msra.mxu0 %v240
        %v242 = vand.u32 %v207, 4294901760
        %243 = vmatpush.msra.mxu0 %v242
        %v244 = vand.u32 %v206, 4294901760
        %245 = vmatpush.msra.mxu0 %v244
        %v246 = vand.u32 %v205, 4294901760
        %247 = vmatpush.msra.mxu0 %v246
        %v248 = vand.u32 %v204, 4294901760
        %249 = vmatpush.msra.mxu0 %v248
        %v250 = vand.u32 %v203, 4294901760
        %251 = vmatpush.msra.mxu0 %v250
        %v252 = vand.u32 %v202, 4294901760
        %253 = vmatpush.msra.mxu0 %v252
        %v254 = vand.u32 %v201, 4294901760
        %v255 = vsub.f32 %v201, %v254
        %v256 = vand.u32 %v255, 4294901760
        %v257 = vsub.f32 %v255, %v256
        %v258 = vand.u32 %v257, 4294901760
        %259 = vmatmul.f32.gmra.mxu0 %v258
        %v260 = vpop.f32.mrf.mxu0
        %v261 = vadd.f32 %v220, %v260
        %262 = vdwg.mxu0
        %v263 = vand.u32 %v217, 4294901760
        %v264 = vsub.f32 %v217, %v263
        %v265 = vand.u32 %v264, 4294901760
        %v266 = vsub.f32 %v264, %v265
        %v267 = vand.u32 %v266, 4294901760
        %268 = vmatpush.msra.mxu0 %v267
        %v269 = vand.u32 %v216, 4294901760
        %v270 = vsub.f32 %v216, %v269
        %v271 = vand.u32 %v270, 4294901760
        %v272 = vsub.f32 %v270, %v271
        %v273 = vand.u32 %v272, 4294901760
        %274 = vmatpush.msra.mxu0 %v273
        %v275 = vand.u32 %v215, 4294901760
        %v276 = vsub.f32 %v215, %v275
        %v277 = vand.u32 %v276, 4294901760
        %v278 = vsub.f32 %v276, %v277
        %v279 = vand.u32 %v278, 4294901760
        %280 = vmatpush.msra.mxu0 %v279
        %v281 = vand.u32 %v214, 4294901760
        %v282 = vsub.f32 %v214, %v281
        %v283 = vand.u32 %v282, 4294901760
        %v284 = vsub.f32 %v282, %v283
        %v285 = vand.u32 %v284, 4294901760
        %286 = vmatpush.msra.mxu0 %v285
        %v287 = vand.u32 %v213, 4294901760
        %v288 = vsub.f32 %v213, %v287
        %v289 = vand.u32 %v288, 4294901760
        %v290 = vsub.f32 %v288, %v289
        %v291 = vand.u32 %v290, 4294901760
        %292 = vmatpush.msra.mxu0 %v291
        %v293 = vand.u32 %v212, 4294901760
        %v294 = vsub.f32 %v212, %v293
        %v295 = vand.u32 %v294, 4294901760
        %v296 = vsub.f32 %v294, %v295
        %v297 = vand.u32 %v296, 4294901760
        %298 = vmatpush.msra.mxu0 %v297
        %v299 = vand.u32 %v211, 4294901760
        %v300 = vsub.f32 %v211, %v299
        %v301 = vand.u32 %v300, 4294901760
        %v302 = vsub.f32 %v300, %v301
        %v303 = vand.u32 %v302, 4294901760
        %304 = vmatpush.msra.mxu0 %v303
        %v305 = vand.u32 %v210, 4294901760
        %v306 = vsub.f32 %v210, %v305
        %v307 = vand.u32 %v306, 4294901760
        %v308 = vsub.f32 %v306, %v307
        %v309 = vand.u32 %v308, 4294901760
        %310 = vmatpush.msra.mxu0 %v309
        %v311 = vand.u32 %v209, 4294901760
        %v312 = vsub.f32 %v209, %v311
        %v313 = vand.u32 %v312, 4294901760
        %v314 = vsub.f32 %v312, %v313
        %v315 = vand.u32 %v314, 4294901760
        %316 = vmatpush.msra.mxu0 %v315
        %v317 = vand.u32 %v208, 4294901760
        %v318 = vsub.f32 %v208, %v317
        %v319 = vand.u32 %v318, 4294901760
        %v320 = vsub.f32 %v318, %v319
        %v321 = vand.u32 %v320, 4294901760
        %322 = vmatpush.msra.mxu0 %v321
        %v323 = vand.u32 %v207, 4294901760
        %v324 = vsub.f32 %v207, %v323
        %v325 = vand.u32 %v324, 4294901760
        %v326 = vsub.f32 %v324, %v325
        %v327 = vand.u32 %v326, 4294901760
        %328 = vmatpush.msra.mxu0 %v327
        %v329 = vand.u32 %v206, 4294901760
        %v330 = vsub.f32 %v206, %v329
        %v331 = vand.u32 %v330, 4294901760
        %v332 = vsub.f32 %v330, %v331
        %v333 = vand.u32 %v332, 4294901760
        %334 = vmatpush.msra.mxu0 %v333
        %v335 = vand.u32 %v205, 4294901760
        %v336 = vsub.f32 %v205, %v335
        %v337 = vand.u32 %v336, 4294901760
        %v338 = vsub.f32 %v336, %v337
        %v339 = vand.u32 %v338, 4294901760
        %340 = vmatpush.msra.mxu0 %v339
        %v341 = vand.u32 %v204, 4294901760
        %v342 = vsub.f32 %v204, %v341
        %v343 = vand.u32 %v342, 4294901760
        %v344 = vsub.f32 %v342, %v343
        %v345 = vand.u32 %v344, 4294901760
        %346 = vmatpush.msra.mxu0 %v345
        %v347 = vand.u32 %v203, 4294901760
        %v348 = vsub.f32 %v203, %v347
        %v349 = vand.u32 %v348, 4294901760
        %v350 = vsub.f32 %v348, %v349
        %v351 = vand.u32 %v350, 4294901760
        %352 = vmatpush.msra.mxu0 %v351
        %v353 = vand.u32 %v202, 4294901760
        %v354 = vsub.f32 %v202, %v353
        %v355 = vand.u32 %v354, 4294901760
        %v356 = vsub.f32 %v354, %v355
        %v357 = vand.u32 %v356, 4294901760
        %358 = vmatpush.msra.mxu0 %v357
        %v359 = vand.u32 %v201, 4294901760
        %360 = vmatmul.f32.gmra.mxu0 %v359
        %v361 = vpop.f32.mrf.mxu0
        %v362 = vadd.f32 %v261, %v361
        %363 = vdwg.mxu0
        %v364 = vand.u32 %v217, 4294901760
        %v365 = vsub.f32 %v217, %v364
        %366 = vmatpush.msra.mxu0 %v365
        %v367 = vand.u32 %v216, 4294901760
        %v368 = vsub.f32 %v216, %v367
        %369 = vmatpush.msra.mxu0 %v368
        %v370 = vand.u32 %v215, 4294901760
        %v371 = vsub.f32 %v215, %v370
        %372 = vmatpush.msra.mxu0 %v371
        %v373 = vand.u32 %v214, 4294901760
        %v374 = vsub.f32 %v214, %v373
        %375 = vmatpush.msra.mxu0 %v374
        %v376 = vand.u32 %v213, 4294901760
        %v377 = vsub.f32 %v213, %v376
        %378 = vmatpush.msra.mxu0 %v377
        %v379 = vand.u32 %v212, 4294901760
        %v380 = vsub.f32 %v212, %v379
        %381 = vmatpush.msra.mxu0 %v380
        %v382 = vand.u32 %v211, 4294901760
        %v383 = vsub.f32 %v211, %v382
        %384 = vmatpush.msra.mxu0 %v383
        %v385 = vand.u32 %v210, 4294901760
        %v386 = vsub.f32 %v210, %v385
        %387 = vmatpush.msra.mxu0 %v386
        %v388 = vand.u32 %v209, 4294901760
        %v389 = vsub.f32 %v209, %v388
        %390 = vmatpush.msra.mxu0 %v389
        %v391 = vand.u32 %v208, 4294901760
        %v392 = vsub.f32 %v208, %v391
        %393 = vmatpush.msra.mxu0 %v392
        %v394 = vand.u32 %v207, 4294901760
        %v395 = vsub.f32 %v207, %v394
        %396 = vmatpush.msra.mxu0 %v395
        %v397 = vand.u32 %v206, 4294901760
        %v398 = vsub.f32 %v206, %v397
        %399 = vmatpush.msra.mxu0 %v398
        %v400 = vand.u32 %v205, 4294901760
        %v401 = vsub.f32 %v205, %v400
        %402 = vmatpush.msra.mxu0 %v401
        %v403 = vand.u32 %v204, 4294901760
        %v404 = vsub.f32 %v204, %v403
        %405 = vmatpush.msra.mxu0 %v404
        %v406 = vand.u32 %v203, 4294901760
        %v407 = vsub.f32 %v203, %v406
        %408 = vmatpush.msra.mxu0 %v407
        %v409 = vand.u32 %v202, 4294901760
        %v410 = vsub.f32 %v202, %v409
        %411 = vmatpush.msra.mxu0 %v410
        %v412 = vand.u32 %v201, 4294901760
        %v413 = vsub.f32 %v201, %v412
        %414 = vmatmul.f32.gmra.mxu0 %v413
        %v415 = vpop.f32.mrf.mxu0
        %v416 = vadd.f32 %v362, %v415
        %417 = vdwg.mxu0
        %v418 = vand.u32 %v217, 4294901760
        %419 = vmatpush.msra.mxu0 %v418
        %v420 = vand.u32 %v216, 4294901760
        %421 = vmatpush.msra.mxu0 %v420
        %v422 = vand.u32 %v215, 4294901760
        %423 = vmatpush.msra.mxu0 %v422
        %v424 = vand.u32 %v214, 4294901760
        %425 = vmatpush.msra.mxu0 %v424
        %v426 = vand.u32 %v213, 4294901760
        %427 = vmatpush.msra.mxu0 %v426
        %v428 = vand.u32 %v212, 4294901760
        %429 = vmatpush.msra.mxu0 %v428
        %v430 = vand.u32 %v211, 4294901760
        %431 = vmatpush.msra.mxu0 %v430
        %v432 = vand.u32 %v210, 4294901760
        %433 = vmatpush.msra.mxu0 %v432
        %v434 = vand.u32 %v209, 4294901760
        %435 = vmatpush.msra.mxu0 %v434
        %v436 = vand.u32 %v208, 4294901760
        %437 = vmatpush.msra.mxu0 %v436
        %v438 = vand.u32 %v207, 4294901760
        %439 = vmatpush.msra.mxu0 %v438
        %v440 = vand.u32 %v206, 4294901760
        %441 = vmatpush.msra.mxu0 %v440
        %v442 = vand.u32 %v205, 4294901760
        %443 = vmatpush.msra.mxu0 %v442
        %v444 = vand.u32 %v204, 4294901760
        %445 = vmatpush.msra.mxu0 %v444
        %v446 = vand.u32 %v203, 4294901760
        %447 = vmatpush.msra.mxu0 %v446
        %v448 = vand.u32 %v202, 4294901760
        %449 = vmatpush.msra.mxu0 %v448
        %v450 = vand.u32 %v201, 4294901760
        %v451 = vsub.f32 %v201, %v450
        %v452 = vand.u32 %v451, 4294901760
        %453 = vmatmul.f32.gmra.mxu0 %v452
        %v454 = vpop.f32.mrf.mxu0
        %v455 = vadd.f32 %v416, %v454
        %456 = vdwg.mxu0
        %v457 = vand.u32 %v217, 4294901760
        %v458 = vsub.f32 %v217, %v457
        %v459 = vand.u32 %v458, 4294901760
        %460 = vmatpush.msra.mxu0 %v459
        %v461 = vand.u32 %v216, 4294901760
        %v462 = vsub.f32 %v216, %v461
        %v463 = vand.u32 %v462, 4294901760
        %464 = vmatpush.msra.mxu0 %v463
        %v465 = vand.u32 %v215, 4294901760
        %v466 = vsub.f32 %v215, %v465
        %v467 = vand.u32 %v466, 4294901760
        %468 = vmatpush.msra.mxu0 %v467
        %v469 = vand.u32 %v214, 4294901760
        %v470 = vsub.f32 %v214, %v469
        %v471 = vand.u32 %v470, 4294901760
        %472 = vmatpush.msra.mxu0 %v471
        %v473 = vand.u32 %v213, 4294901760
        %v474 = vsub.f32 %v213, %v473
        %v475 = vand.u32 %v474, 4294901760
        %476 = vmatpush.msra.mxu0 %v475
        %v477 = vand.u32 %v212, 4294901760
        %v478 = vsub.f32 %v212, %v477
        %v479 = vand.u32 %v478, 4294901760
        %480 = vmatpush.msra.mxu0 %v479
        %v481 = vand.u32 %v211, 4294901760
        %v482 = vsub.f32 %v211, %v481
        %v483 = vand.u32 %v482, 4294901760
        %484 = vmatpush.msra.mxu0 %v483
        %v485 = vand.u32 %v210, 4294901760
        %v486 = vsub.f32 %v210, %v485
        %v487 = vand.u32 %v486, 4294901760
        %488 = vmatpush.msra.mxu0 %v487
        %v489 = vand.u32 %v209, 4294901760
        %v490 = vsub.f32 %v209, %v489
        %v491 = vand.u32 %v490, 4294901760
        %492 = vmatpush.msra.mxu0 %v491
        %v493 = vand.u32 %v208, 4294901760
        %v494 = vsub.f32 %v208, %v493
        %v495 = vand.u32 %v494, 4294901760
        %496 = vmatpush.msra.mxu0 %v495
        %v497 = vand.u32 %v207, 4294901760
        %v498 = vsub.f32 %v207, %v497
        %v499 = vand.u32 %v498, 4294901760
        %500 = vmatpush.msra.mxu0 %v499
        %v501 = vand.u32 %v206, 4294901760
        %v502 = vsub.f32 %v206, %v501
        %v503 = vand.u32 %v502, 4294901760
        %504 = vmatpush.msra.mxu0 %v503
        %v505 = vand.u32 %v205, 4294901760
        %v506 = vsub.f32 %v205, %v505
        %v507 = vand.u32 %v506, 4294901760
        %508 = vmatpush.msra.mxu0 %v507
        %v509 = vand.u32 %v204, 4294901760
        %v510 = vsub.f32 %v204, %v509
        %v511 = vand.u32 %v510, 4294901760
        %512 = vmatpush.msra.mxu0 %v511
        %v513 = vand.u32 %v203, 4294901760
        %v514 = vsub.f32 %v203, %v513
        %v515 = vand.u32 %v514, 4294901760
        %516 = vmatpush.msra.mxu0 %v515
        %v517 = vand.u32 %v202, 4294901760
        %v518 = vsub.f32 %v202, %v517
        %v519 = vand.u32 %v518, 4294901760
        %520 = vmatpush.msra.mxu0 %v519
        %v521 = vand.u32 %v201, 4294901760
        %522 = vmatmul.f32.gmra.mxu0 %v521
        %v523 = vpop.f32.mrf.mxu0
        %v524 = vadd.f32 %v455, %v523
        %525 = vdwg.mxu0
        %v526 = vand.u32 %v217, 4294901760
        %527 = vmatpush.msra.mxu0 %v526
        %v528 = vand.u32 %v216, 4294901760
        %529 = vmatpush.msra.mxu0 %v528
        %v530 = vand.u32 %v215, 4294901760
        %531 = vmatpush.msra.mxu0 %v530
        %v532 = vand.u32 %v214, 4294901760
        %533 = vmatpush.msra.mxu0 %v532
        %v534 = vand.u32 %v213, 4294901760
        %535 = vmatpush.msra.mxu0 %v534
        %v536 = vand.u32 %v212, 4294901760
        %537 = vmatpush.msra.mxu0 %v536
        %v538 = vand.u32 %v211, 4294901760
        %539 = vmatpush.msra.mxu0 %v538
        %v540 = vand.u32 %v210, 4294901760
        %541 = vmatpush.msra.mxu0 %v540
        %v542 = vand.u32 %v209, 4294901760
        %543 = vmatpush.msra.mxu0 %v542
        %v544 = vand.u32 %v208, 4294901760
        %545 = vmatpush.msra.mxu0 %v544
        %v546 = vand.u32 %v207, 4294901760
        %547 = vmatpush.msra.mxu0 %v546
        %v548 = vand.u32 %v206, 4294901760
        %549 = vmatpush.msra.mxu0 %v548
        %v550 = vand.u32 %v205, 4294901760
        %551 = vmatpush.msra.mxu0 %v550
        %v552 = vand.u32 %v204, 4294901760
        %553 = vmatpush.msra.mxu0 %v552
        %v554 = vand.u32 %v203, 4294901760
        %555 = vmatpush.msra.mxu0 %v554
        %v556 = vand.u32 %v202, 4294901760
        %557 = vmatpush.msra.mxu0 %v556
        %v558 = vand.u32 %v201, 4294901760
        %559 = vmatmul.f32.gmra.mxu0 %v558
        %v560 = vpop.f32.mrf.mxu0
        %v561 = vadd.f32 %v524, %v560
        %562 = vdwg.mxu0
        %s563 = sadd.s32 %s199, 1
        %s564 = scalar_lea.vmem [#allocation2], %s563
        %v565 = vld [vmem:[%s564] sm:$0xff]
        %s566 = scalar_lea.vmem [#allocation6], 128
        %v567 = vld [vmem:[%s566] sm:$0xff]
        %v568 = vld [vmem:[%s566 + $0x8] sm:$0xff]
        %v569 = vld [vmem:[%s566 + $0x10] sm:$0xff]
        %v570 = vld [vmem:[%s566 + $0x18] sm:$0xff]
        %v571 = vld [vmem:[%s566 + $0x20] sm:$0xff]
        %v572 = vld [vmem:[%s566 + $0x28] sm:$0xff]
        %v573 = vld [vmem:[%s566 + $0x30] sm:$0xff]
        %v574 = vld [vmem:[%s566 + $0x38] sm:$0xff]
        %v575 = vld [vmem:[%s566 + $0x40] sm:$0xff]
        %v576 = vld [vmem:[%s566 + $0x48] sm:$0xff]
        %v577 = vld [vmem:[%s566 + $0x50] sm:$0xff]
        %v578 = vld [vmem:[%s566 + $0x58] sm:$0xff]
        %v579 = vld [vmem:[%s566 + $0x60] sm:$0xff]
        %v580 = vld [vmem:[%s566 + $0x68] sm:$0xff]
        %v581 = vld [vmem:[%s566 + $0x70] sm:$0xff]
        %v582 = vld [vmem:[%s566 + $0x78] sm:$0xff]
        %v583 = vand.u32 %v582, 4294901760
        %584 = vmatpush.msra.mxu0 %v583
        %v585 = vand.u32 %v581, 4294901760
        %586 = vmatpush.msra.mxu0 %v585
        %v587 = vand.u32 %v580, 4294901760
        %588 = vmatpush.msra.mxu0 %v587
        %v589 = vand.u32 %v579, 4294901760
        %590 = vmatpush.msra.mxu0 %v589
        %v591 = vand.u32 %v578, 4294901760
        %592 = vmatpush.msra.mxu0 %v591
        %v593 = vand.u32 %v577, 4294901760
        %594 = vmatpush.msra.mxu0 %v593
        %v595 = vand.u32 %v576, 4294901760
        %596 = vmatpush.msra.mxu0 %v595
        %v597 = vand.u32 %v575, 4294901760
        %598 = vmatpush.msra.mxu0 %v597
        %v599 = vand.u32 %v574, 4294901760
        %600 = vmatpush.msra.mxu0 %v599
        %v601 = vand.u32 %v573, 4294901760
        %602 = vmatpush.msra.mxu0 %v601
        %v603 = vand.u32 %v572, 4294901760
        %604 = vmatpush.msra.mxu0 %v603
        %v605 = vand.u32 %v571, 4294901760
        %606 = vmatpush.msra.mxu0 %v605
        %v607 = vand.u32 %v570, 4294901760
        %608 = vmatpush.msra.mxu0 %v607
        %v609 = vand.u32 %v569, 4294901760
        %610 = vmatpush.msra.mxu0 %v609
        %v611 = vand.u32 %v568, 4294901760
        %612 = vmatpush.msra.mxu0 %v611
        %v613 = vand.u32 %v567, 4294901760
        %614 = vmatpush.msra.mxu0 %v613
        %v615 = vand.u32 %v565, 4294901760
        %v616 = vsub.f32 %v565, %v615
        %v617 = vand.u32 %v616, 4294901760
        %v618 = vsub.f32 %v616, %v617
        %v619 = vand.u32 %v618, 4294901760
        %620 = vmatmul.f32.gmra.mxu0 %v619
        %v621 = vpop.f32.mrf.mxu0
        %v622 = vadd.f32 0.0, %v621
        %623 = vdwg.mxu0
        %v624 = vand.u32 %v582, 4294901760
        %v625 = vsub.f32 %v582, %v624
        %v626 = vand.u32 %v625, 4294901760
        %v627 = vsub.f32 %v625, %v626
        %v628 = vand.u32 %v627, 4294901760
        %629 = vmatpush.msra.mxu0 %v628
        %v630 = vand.u32 %v581, 4294901760
        %v631 = vsub.f32 %v581, %v630
        %v632 = vand.u32 %v631, 4294901760
        %v633 = vsub.f32 %v631, %v632
        %v634 = vand.u32 %v633, 4294901760
        %635 = vmatpush.msra.mxu0 %v634
        %v636 = vand.u32 %v580, 4294901760
        %v637 = vsub.f32 %v580, %v636
        %v638 = vand.u32 %v637, 4294901760
        %v639 = vsub.f32 %v637, %v638
        %v640 = vand.u32 %v639, 4294901760
        %641 = vmatpush.msra.mxu0 %v640
        %v642 = vand.u32 %v579, 4294901760
        %v643 = vsub.f32 %v579, %v642
        %v644 = vand.u32 %v643, 4294901760
        %v645 = vsub.f32 %v643, %v644
        %v646 = vand.u32 %v645, 4294901760
        %647 = vmatpush.msra.mxu0 %v646
        %v648 = vand.u32 %v578, 4294901760
        %v649 = vsub.f32 %v578, %v648
        %v650 = vand.u32 %v649, 4294901760
        %v651 = vsub.f32 %v649, %v650
        %v652 = vand.u32 %v651, 4294901760
        %653 = vmatpush.msra.mxu0 %v652
        %v654 = vand.u32 %v577, 4294901760
        %v655 = vsub.f32 %v577, %v654
        %v656 = vand.u32 %v655, 4294901760
        %v657 = vsub.f32 %v655, %v656
        %v658 = vand.u32 %v657, 4294901760
        %659 = vmatpush.msra.mxu0 %v658
        %v660 = vand.u32 %v576, 4294901760
        %v661 = vsub.f32 %v576, %v660
        %v662 = vand.u32 %v661, 4294901760
        %v663 = vsub.f32 %v661, %v662
        %v664 = vand.u32 %v663, 4294901760
        %665 = vmatpush.msra.mxu0 %v664
        %v666 = vand.u32 %v575, 4294901760
        %v667 = vsub.f32 %v575, %v666
        %v668 = vand.u32 %v667, 4294901760
        %v669 = vsub.f32 %v667, %v668
        %v670 = vand.u32 %v669, 4294901760
        %671 = vmatpush.msra.mxu0 %v670
        %v672 = vand.u32 %v574, 4294901760
        %v673 = vsub.f32 %v574, %v672
        %v674 = vand.u32 %v673, 4294901760
        %v675 = vsub.f32 %v673, %v674
        %v676 = vand.u32 %v675, 4294901760
        %677 = vmatpush.msra.mxu0 %v676
        %v678 = vand.u32 %v573, 4294901760
        %v679 = vsub.f32 %v573, %v678
        %v680 = vand.u32 %v679, 4294901760
        %v681 = vsub.f32 %v679, %v680
        %v682 = vand.u32 %v681, 4294901760
        %683 = vmatpush.msra.mxu0 %v682
        %v684 = vand.u32 %v572, 4294901760
        %v685 = vsub.f32 %v572, %v684
        %v686 = vand.u32 %v685, 4294901760
        %v687 = vsub.f32 %v685, %v686
        %v688 = vand.u32 %v687, 4294901760
        %689 = vmatpush.msra.mxu0 %v688
        %v690 = vand.u32 %v571, 4294901760
        %v691 = vsub.f32 %v571, %v690
        %v692 = vand.u32 %v691, 4294901760
        %v693 = vsub.f32 %v691, %v692
        %v694 = vand.u32 %v693, 4294901760
        %695 = vmatpush.msra.mxu0 %v694
        %v696 = vand.u32 %v570, 4294901760
        %v697 = vsub.f32 %v570, %v696
        %v698 = vand.u32 %v697, 4294901760
        %v699 = vsub.f32 %v697, %v698
        %v700 = vand.u32 %v699, 4294901760
        %701 = vmatpush.msra.mxu0 %v700
        %v702 = vand.u32 %v569, 4294901760
        %v703 = vsub.f32 %v569, %v702
        %v704 = vand.u32 %v703, 4294901760
        %v705 = vsub.f32 %v703, %v704
        %v706 = vand.u32 %v705, 4294901760
        %707 = vmatpush.msra.mxu0 %v706
        %v708 = vand.u32 %v568, 4294901760
        %v709 = vsub.f32 %v568, %v708
        %v710 = vand.u32 %v709, 4294901760
        %v711 = vsub.f32 %v709, %v710
        %v712 = vand.u32 %v711, 4294901760
        %713 = vmatpush.msra.mxu0 %v712
        %v714 = vand.u32 %v567, 4294901760
        %v715 = vsub.f32 %v567, %v714
        %v716 = vand.u32 %v715, 4294901760
        %v717 = vsub.f32 %v715, %v716
        %v718 = vand.u32 %v717, 4294901760
        %719 = vmatpush.msra.mxu0 %v718
        %v720 = vand.u32 %v565, 4294901760
        %721 = vmatmul.f32.gmra.mxu0 %v720
        %v722 = vpop.f32.mrf.mxu0
        %v723 = vadd.f32 %v622, %v722
        %724 = vdwg.mxu0
        %v725 = vand.u32 %v582, 4294901760
        %v726 = vsub.f32 %v582, %v725
        %727 = vmatpush.msra.mxu0 %v726
        %v728 = vand.u32 %v581, 4294901760
        %v729 = vsub.f32 %v581, %v728
        %730 = vmatpush.msra.mxu0 %v729
        %v731 = vand.u32 %v580, 4294901760
        %v732 = vsub.f32 %v580, %v731
        %733 = vmatpush.msra.mxu0 %v732
        %v734 = vand.u32 %v579, 4294901760
        %v735 = vsub.f32 %v579, %v734
        %736 = vmatpush.msra.mxu0 %v735
        %v737 = vand.u32 %v578, 4294901760
        %v738 = vsub.f32 %v578, %v737
        %739 = vmatpush.msra.mxu0 %v738
        %v740 = vand.u32 %v577, 4294901760
        %v741 = vsub.f32 %v577, %v740
        %742 = vmatpush.msra.mxu0 %v741
        %v743 = vand.u32 %v576, 4294901760
        %v744 = vsub.f32 %v576, %v743
        %745 = vmatpush.msra.mxu0 %v744
        %v746 = vand.u32 %v575, 4294901760
        %v747 = vsub.f32 %v575, %v746
        %748 = vmatpush.msra.mxu0 %v747
        %v749 = vand.u32 %v574, 4294901760
        %v750 = vsub.f32 %v574, %v749
        %751 = vmatpush.msra.mxu0 %v750
        %v752 = vand.u32 %v573, 4294901760
        %v753 = vsub.f32 %v573, %v752
        %754 = vmatpush.msra.mxu0 %v753
        %v755 = vand.u32 %v572, 4294901760
        %v756 = vsub.f32 %v572, %v755
        %757 = vmatpush.msra.mxu0 %v756
        %v758 = vand.u32 %v571, 4294901760
        %v759 = vsub.f32 %v571, %v758
        %760 = vmatpush.msra.mxu0 %v759
        %v761 = vand.u32 %v570, 4294901760
        %v762 = vsub.f32 %v570, %v761
        %763 = vmatpush.msra.mxu0 %v762
        %v764 = vand.u32 %v569, 4294901760
        %v765 = vsub.f32 %v569, %v764
        %766 = vmatpush.msra.mxu0 %v765
        %v767 = vand.u32 %v568, 4294901760
        %v768 = vsub.f32 %v568, %v767
        %769 = vmatpush.msra.mxu0 %v768
        %v770 = vand.u32 %v567, 4294901760
        %v771 = vsub.f32 %v567, %v770
        %772 = vmatpush.msra.mxu0 %v771
        %v773 = vand.u32 %v565, 4294901760
        %v774 = vsub.f32 %v565, %v773
        %775 = vmatmul.f32.gmra.mxu0 %v774
        %v776 = vpop.f32.mrf.mxu0
        %v777 = vadd.f32 %v723, %v776
        %778 = vdwg.mxu0
        %v779 = vand.u32 %v582, 4294901760
        %780 = vmatpush.msra.mxu0 %v779
        %v781 = vand.u32 %v581, 4294901760
        %782 = vmatpush.msra.mxu0 %v781
        %v783 = vand.u32 %v580, 4294901760
        %784 = vmatpush.msra.mxu0 %v783
        %v785 = vand.u32 %v579, 4294901760
        %786 = vmatpush.msra.mxu0 %v785
        %v787 = vand.u32 %v578, 4294901760
        %788 = vmatpush.msra.mxu0 %v787
        %v789 = vand.u32 %v577, 4294901760
        %790 = vmatpush.msra.mxu0 %v789
        %v791 = vand.u32 %v576, 4294901760
        %792 = vmatpush.msra.mxu0 %v791
        %v793 = vand.u32 %v575, 4294901760
        %794 = vmatpush.msra.mxu0 %v793
        %v795 = vand.u32 %v574, 4294901760
        %796 = vmatpush.msra.mxu0 %v795
        %v797 = vand.u32 %v573, 4294901760
        %798 = vmatpush.msra.mxu0 %v797
        %v799 = vand.u32 %v572, 4294901760
        %800 = vmatpush.msra.mxu0 %v799
        %v801 = vand.u32 %v571, 4294901760
        %802 = vmatpush.msra.mxu0 %v801
        %v803 = vand.u32 %v570, 4294901760
        %804 = vmatpush.msra.mxu0 %v803
        %v805 = vand.u32 %v569, 4294901760
        %806 = vmatpush.msra.mxu0 %v805
        %v807 = vand.u32 %v568, 4294901760
        %808 = vmatpush.msra.mxu0 %v807
        %v809 = vand.u32 %v567, 4294901760
        %810 = vmatpush.msra.mxu0 %v809
        %v811 = vand.u32 %v565, 4294901760
        %v812 = vsub.f32 %v565, %v811
        %v813 = vand.u32 %v812, 4294901760
        %814 = vmatmul.f32.gmra.mxu0 %v813
        %v815 = vpop.f32.mrf.mxu0
        %v816 = vadd.f32 %v777, %v815
        %817 = vdwg.mxu0
        %v818 = vand.u32 %v582, 4294901760
        %v819 = vsub.f32 %v582, %v818
        %v820 = vand.u32 %v819, 4294901760
        %821 = vmatpush.msra.mxu0 %v820
        %v822 = vand.u32 %v581, 4294901760
        %v823 = vsub.f32 %v581, %v822
        %v824 = vand.u32 %v823, 4294901760
        %825 = vmatpush.msra.mxu0 %v824
        %v826 = vand.u32 %v580, 4294901760
        %v827 = vsub.f32 %v580, %v826
        %v828 = vand.u32 %v827, 4294901760
        %829 = vmatpush.msra.mxu0 %v828
        %v830 = vand.u32 %v579, 4294901760
        %v831 = vsub.f32 %v579, %v830
        %v832 = vand.u32 %v831, 4294901760
        %833 = vmatpush.msra.mxu0 %v832
        %v834 = vand.u32 %v578, 4294901760
        %v835 = vsub.f32 %v578, %v834
        %v836 = vand.u32 %v835, 4294901760
        %837 = vmatpush.msra.mxu0 %v836
        %v838 = vand.u32 %v577, 4294901760
        %v839 = vsub.f32 %v577, %v838
        %v840 = vand.u32 %v839, 4294901760
        %841 = vmatpush.msra.mxu0 %v840
        %v842 = vand.u32 %v576, 4294901760
        %v843 = vsub.f32 %v576, %v842
        %v844 = vand.u32 %v843, 4294901760
        %845 = vmatpush.msra.mxu0 %v844
        %v846 = vand.u32 %v575, 4294901760
        %v847 = vsub.f32 %v575, %v846
        %v848 = vand.u32 %v847, 4294901760
        %849 = vmatpush.msra.mxu0 %v848
        %v850 = vand.u32 %v574, 4294901760
        %v851 = vsub.f32 %v574, %v850
        %v852 = vand.u32 %v851, 4294901760
        %853 = vmatpush.msra.mxu0 %v852
        %v854 = vand.u32 %v573, 4294901760
        %v855 = vsub.f32 %v573, %v854
        %v856 = vand.u32 %v855, 4294901760
        %857 = vmatpush.msra.mxu0 %v856
        %v858 = vand.u32 %v572, 4294901760
        %v859 = vsub.f32 %v572, %v858
        %v860 = vand.u32 %v859, 4294901760
        %861 = vmatpush.msra.mxu0 %v860
        %v862 = vand.u32 %v571, 4294901760
        %v863 = vsub.f32 %v571, %v862
        %v864 = vand.u32 %v863, 4294901760
        %865 = vmatpush.msra.mxu0 %v864
        %v866 = vand.u32 %v570, 4294901760
        %v867 = vsub.f32 %v570, %v866
        %v868 = vand.u32 %v867, 4294901760
        %869 = vmatpush.msra.mxu0 %v868
        %v870 = vand.u32 %v569, 4294901760
        %v871 = vsub.f32 %v569, %v870
        %v872 = vand.u32 %v871, 4294901760
        %873 = vmatpush.msra.mxu0 %v872
        %v874 = vand.u32 %v568, 4294901760
        %v875 = vsub.f32 %v568, %v874
        %v876 = vand.u32 %v875, 4294901760
        %877 = vmatpush.msra.mxu0 %v876
        %v878 = vand.u32 %v567, 4294901760
        %v879 = vsub.f32 %v567, %v878
        %v880 = vand.u32 %v879, 4294901760
        %881 = vmatpush.msra.mxu0 %v880
        %v882 = vand.u32 %v565, 4294901760
        %883 = vmatmul.f32.gmra.mxu0 %v882
        %v884 = vpop.f32.mrf.mxu0
        %v885 = vadd.f32 %v816, %v884
        %886 = vdwg.mxu0
        %v887 = vand.u32 %v582, 4294901760
        %888 = vmatpush.msra.mxu0 %v887
        %v889 = vand.u32 %v581, 4294901760
        %890 = vmatpush.msra.mxu0 %v889
        %v891 = vand.u32 %v580, 4294901760
        %892 = vmatpush.msra.mxu0 %v891
        %v893 = vand.u32 %v579, 4294901760
        %894 = vmatpush.msra.mxu0 %v893
        %v895 = vand.u32 %v578, 4294901760
        %896 = vmatpush.msra.mxu0 %v895
        %v897 = vand.u32 %v577, 4294901760
        %898 = vmatpush.msra.mxu0 %v897
        %v899 = vand.u32 %v576, 4294901760
        %900 = vmatpush.msra.mxu0 %v899
        %v901 = vand.u32 %v575, 4294901760
        %902 = vmatpush.msra.mxu0 %v901
        %v903 = vand.u32 %v574, 4294901760
        %904 = vmatpush.msra.mxu0 %v903
        %v905 = vand.u32 %v573, 4294901760
        %906 = vmatpush.msra.mxu0 %v905
        %v907 = vand.u32 %v572, 4294901760
        %908 = vmatpush.msra.mxu0 %v907
        %v909 = vand.u32 %v571, 4294901760
        %910 = vmatpush.msra.mxu0 %v909
        %v911 = vand.u32 %v570, 4294901760
        %912 = vmatpush.msra.mxu0 %v911
        %v913 = vand.u32 %v569, 4294901760
        %914 = vmatpush.msra.mxu0 %v913
        %v915 = vand.u32 %v568, 4294901760
        %916 = vmatpush.msra.mxu0 %v915
        %v917 = vand.u32 %v567, 4294901760
        %918 = vmatpush.msra.mxu0 %v917
        %v919 = vand.u32 %v565, 4294901760
        %920 = vmatmul.f32.gmra.mxu0 %v919
        %v921 = vpop.f32.mrf.mxu0
        %v922 = vadd.f32 %v885, %v921
        %923 = vdwg.mxu0
        %v924 = vadd.f32 %v561, %v922
        %s925 = sadd.s32 %s199, 2
        %s926 = scalar_lea.vmem [#allocation2], %s925
        %v927 = vld [vmem:[%s926] sm:$0xff]
        %s928 = scalar_lea.vmem [#allocation6], 256
        %v929 = vld [vmem:[%s928] sm:$0xff]
        %v930 = vld [vmem:[%s928 + $0x8] sm:$0xff]
        %v931 = vld [vmem:[%s928 + $0x10] sm:$0xff]
        %v932 = vld [vmem:[%s928 + $0x18] sm:$0xff]
        %v933 = vld [vmem:[%s928 + $0x20] sm:$0xff]
        %v934 = vld [vmem:[%s928 + $0x28] sm:$0xff]
        %v935 = vld [vmem:[%s928 + $0x30] sm:$0xff]
        %v936 = vld [vmem:[%s928 + $0x38] sm:$0xff]
        %v937 = vld [vmem:[%s928 + $0x40] sm:$0xff]
        %v938 = vld [vmem:[%s928 + $0x48] sm:$0xff]
        %v939 = vld [vmem:[%s928 + $0x50] sm:$0xff]
        %v940 = vld [vmem:[%s928 + $0x58] sm:$0xff]
        %v941 = vld [vmem:[%s928 + $0x60] sm:$0xff]
        %v942 = vld [vmem:[%s928 + $0x68] sm:$0xff]
        %v943 = vld [vmem:[%s928 + $0x70] sm:$0xff]
        %v944 = vld [vmem:[%s928 + $0x78] sm:$0xff]
        %v945 = vand.u32 %v944, 4294901760
        %946 = vmatpush.msra.mxu0 %v945
        %v947 = vand.u32 %v943, 4294901760
        %948 = vmatpush.msra.mxu0 %v947
        %v949 = vand.u32 %v942, 4294901760
        %950 = vmatpush.msra.mxu0 %v949
        %v951 = vand.u32 %v941, 4294901760
        %952 = vmatpush.msra.mxu0 %v951
        %v953 = vand.u32 %v940, 4294901760
        %954 = vmatpush.msra.mxu0 %v953
        %v955 = vand.u32 %v939, 4294901760
        %956 = vmatpush.msra.mxu0 %v955
        %v957 = vand.u32 %v938, 4294901760
        %958 = vmatpush.msra.mxu0 %v957
        %v959 = vand.u32 %v937, 4294901760
        %960 = vmatpush.msra.mxu0 %v959
        %v961 = vand.u32 %v936, 4294901760
        %962 = vmatpush.msra.mxu0 %v961
        %v963 = vand.u32 %v935, 4294901760
        %964 = vmatpush.msra.mxu0 %v963
        %v965 = vand.u32 %v934, 4294901760
        %966 = vmatpush.msra.mxu0 %v965
        %v967 = vand.u32 %v933, 4294901760
        %968 = vmatpush.msra.mxu0 %v967
        %v969 = vand.u32 %v932, 4294901760
        %970 = vmatpush.msra.mxu0 %v969
        %v971 = vand.u32 %v931, 4294901760
        %972 = vmatpush.msra.mxu0 %v971
        %v973 = vand.u32 %v930, 4294901760
        %974 = vmatpush.msra.mxu0 %v973
        %v975 = vand.u32 %v929, 4294901760
        %976 = vmatpush.msra.mxu0 %v975
        %v977 = vand.u32 %v927, 4294901760
        %v978 = vsub.f32 %v927, %v977
        %v979 = vand.u32 %v978, 4294901760
        %v980 = vsub.f32 %v978, %v979
        %v981 = vand.u32 %v980, 4294901760
        %982 = vmatmul.f32.gmra.mxu0 %v981
        %v983 = vpop.f32.mrf.mxu0
        %v984 = vadd.f32 0.0, %v983
        %985 = vdwg.mxu0
        %v986 = vand.u32 %v944, 4294901760
        %v987 = vsub.f32 %v944, %v986
        %v988 = vand.u32 %v987, 4294901760
        %v989 = vsub.f32 %v987, %v988
        %v990 = vand.u32 %v989, 4294901760
        %991 = vmatpush.msra.mxu0 %v990
        %v992 = vand.u32 %v943, 4294901760
        %v993 = vsub.f32 %v943, %v992
        %v994 = vand.u32 %v993, 4294901760
        %v995 = vsub.f32 %v993, %v994
        %v996 = vand.u32 %v995, 4294901760
        %997 = vmatpush.msra.mxu0 %v996
        %v998 = vand.u32 %v942, 4294901760
        %v999 = vsub.f32 %v942, %v998
        %v1000 = vand.u32 %v999, 4294901760
        %v1001 = vsub.f32 %v999, %v1000
        %v1002 = vand.u32 %v1001, 4294901760
        %1003 = vmatpush.msra.mxu0 %v1002
        %v1004 = vand.u32 %v941, 4294901760
        %v1005 = vsub.f32 %v941, %v1004
        %v1006 = vand.u32 %v1005, 4294901760
        %v1007 = vsub.f32 %v1005, %v1006
        %v1008 = vand.u32 %v1007, 4294901760
        %1009 = vmatpush.msra.mxu0 %v1008
        %v1010 = vand.u32 %v940, 4294901760
        %v1011 = vsub.f32 %v940, %v1010
        %v1012 = vand.u32 %v1011, 4294901760
        %v1013 = vsub.f32 %v1011, %v1012
        %v1014 = vand.u32 %v1013, 4294901760
        %1015 = vmatpush.msra.mxu0 %v1014
        %v1016 = vand.u32 %v939, 4294901760
        %v1017 = vsub.f32 %v939, %v1016
        %v1018 = vand.u32 %v1017, 4294901760
        %v1019 = vsub.f32 %v1017, %v1018
        %v1020 = vand.u32 %v1019, 4294901760
        %1021 = vmatpush.msra.mxu0 %v1020
        %v1022 = vand.u32 %v938, 4294901760
        %v1023 = vsub.f32 %v938, %v1022
        %v1024 = vand.u32 %v1023, 4294901760
        %v1025 = vsub.f32 %v1023, %v1024
        %v1026 = vand.u32 %v1025, 4294901760
        %1027 = vmatpush.msra.mxu0 %v1026
        %v1028 = vand.u32 %v937, 4294901760
        %v1029 = vsub.f32 %v937, %v1028
        %v1030 = vand.u32 %v1029, 4294901760
        %v1031 = vsub.f32 %v1029, %v1030
        %v1032 = vand.u32 %v1031, 4294901760
        %1033 = vmatpush.msra.mxu0 %v1032
        %v1034 = vand.u32 %v936, 4294901760
        %v1035 = vsub.f32 %v936, %v1034
        %v1036 = vand.u32 %v1035, 4294901760
        %v1037 = vsub.f32 %v1035, %v1036
        %v1038 = vand.u32 %v1037, 4294901760
        %1039 = vmatpush.msra.mxu0 %v1038
        %v1040 = vand.u32 %v935, 4294901760
        %v1041 = vsub.f32 %v935, %v1040
        %v1042 = vand.u32 %v1041, 4294901760
        %v1043 = vsub.f32 %v1041, %v1042
        %v1044 = vand.u32 %v1043, 4294901760
        %1045 = vmatpush.msra.mxu0 %v1044
        %v1046 = vand.u32 %v934, 4294901760
        %v1047 = vsub.f32 %v934, %v1046
        %v1048 = vand.u32 %v1047, 4294901760
        %v1049 = vsub.f32 %v1047, %v1048
        %v1050 = vand.u32 %v1049, 4294901760
        %1051 = vmatpush.msra.mxu0 %v1050
        %v1052 = vand.u32 %v933, 4294901760
        %v1053 = vsub.f32 %v933, %v1052
        %v1054 = vand.u32 %v1053, 4294901760
        %v1055 = vsub.f32 %v1053, %v1054
        %v1056 = vand.u32 %v1055, 4294901760
        %1057 = vmatpush.msra.mxu0 %v1056
        %v1058 = vand.u32 %v932, 4294901760
        %v1059 = vsub.f32 %v932, %v1058
        %v1060 = vand.u32 %v1059, 4294901760
        %v1061 = vsub.f32 %v1059, %v1060
        %v1062 = vand.u32 %v1061, 4294901760
        %1063 = vmatpush.msra.mxu0 %v1062
        %v1064 = vand.u32 %v931, 4294901760
        %v1065 = vsub.f32 %v931, %v1064
        %v1066 = vand.u32 %v1065, 4294901760
        %v1067 = vsub.f32 %v1065, %v1066
        %v1068 = vand.u32 %v1067, 4294901760
        %1069 = vmatpush.msra.mxu0 %v1068
        %v1070 = vand.u32 %v930, 4294901760
        %v1071 = vsub.f32 %v930, %v1070
        %v1072 = vand.u32 %v1071, 4294901760
        %v1073 = vsub.f32 %v1071, %v1072
        %v1074 = vand.u32 %v1073, 4294901760
        %1075 = vmatpush.msra.mxu0 %v1074
        %v1076 = vand.u32 %v929, 4294901760
        %v1077 = vsub.f32 %v929, %v1076
        %v1078 = vand.u32 %v1077, 4294901760
        %v1079 = vsub.f32 %v1077, %v1078
        %v1080 = vand.u32 %v1079, 4294901760
        %1081 = vmatpush.msra.mxu0 %v1080
        %v1082 = vand.u32 %v927, 4294901760
        %1083 = vmatmul.f32.gmra.mxu0 %v1082
        %v1084 = vpop.f32.mrf.mxu0
        %v1085 = vadd.f32 %v984, %v1084
        %1086 = vdwg.mxu0
        %v1087 = vand.u32 %v944, 4294901760
        %v1088 = vsub.f32 %v944, %v1087
        %1089 = vmatpush.msra.mxu0 %v1088
        %v1090 = vand.u32 %v943, 4294901760
        %v1091 = vsub.f32 %v943, %v1090
        %1092 = vmatpush.msra.mxu0 %v1091
        %v1093 = vand.u32 %v942, 4294901760
        %v1094 = vsub.f32 %v942, %v1093
        %1095 = vmatpush.msra.mxu0 %v1094
        %v1096 = vand.u32 %v941, 4294901760
        %v1097 = vsub.f32 %v941, %v1096
        %1098 = vmatpush.msra.mxu0 %v1097
        %v1099 = vand.u32 %v940, 4294901760
        %v1100 = vsub.f32 %v940, %v1099
        %1101 = vmatpush.msra.mxu0 %v1100
        %v1102 = vand.u32 %v939, 4294901760
        %v1103 = vsub.f32 %v939, %v1102
        %1104 = vmatpush.msra.mxu0 %v1103
        %v1105 = vand.u32 %v938, 4294901760
        %v1106 = vsub.f32 %v938, %v1105
        %1107 = vmatpush.msra.mxu0 %v1106
        %v1108 = vand.u32 %v937, 4294901760
        %v1109 = vsub.f32 %v937, %v1108
        %1110 = vmatpush.msra.mxu0 %v1109
        %v1111 = vand.u32 %v936, 4294901760
        %v1112 = vsub.f32 %v936, %v1111
        %1113 = vmatpush.msra.mxu0 %v1112
        %v1114 = vand.u32 %v935, 4294901760
        %v1115 = vsub.f32 %v935, %v1114
        %1116 = vmatpush.msra.mxu0 %v1115
        %v1117 = vand.u32 %v934, 4294901760
        %v1118 = vsub.f32 %v934, %v1117
        %1119 = vmatpush.msra.mxu0 %v1118
        %v1120 = vand.u32 %v933, 4294901760
        %v1121 = vsub.f32 %v933, %v1120
        %1122 = vmatpush.msra.mxu0 %v1121
        %v1123 = vand.u32 %v932, 4294901760
        %v1124 = vsub.f32 %v932, %v1123
        %1125 = vmatpush.msra.mxu0 %v1124
        %v1126 = vand.u32 %v931, 4294901760
        %v1127 = vsub.f32 %v931, %v1126
        %1128 = vmatpush.msra.mxu0 %v1127
        %v1129 = vand.u32 %v930, 4294901760
        %v1130 = vsub.f32 %v930, %v1129
        %1131 = vmatpush.msra.mxu0 %v1130
        %v1132 = vand.u32 %v929, 4294901760
        %v1133 = vsub.f32 %v929, %v1132
        %1134 = vmatpush.msra.mxu0 %v1133
        %v1135 = vand.u32 %v927, 4294901760
        %v1136 = vsub.f32 %v927, %v1135
        %1137 = vmatmul.f32.gmra.mxu0 %v1136
        %v1138 = vpop.f32.mrf.mxu0
        %v1139 = vadd.f32 %v1085, %v1138
        %1140 = vdwg.mxu0
        %v1141 = vand.u32 %v944, 4294901760
        %1142 = vmatpush.msra.mxu0 %v1141
        %v1143 = vand.u32 %v943, 4294901760
        %1144 = vmatpush.msra.mxu0 %v1143
        %v1145 = vand.u32 %v942, 4294901760
        %1146 = vmatpush.msra.mxu0 %v1145
        %v1147 = vand.u32 %v941, 4294901760
        %1148 = vmatpush.msra.mxu0 %v1147
        %v1149 = vand.u32 %v940, 4294901760
        %1150 = vmatpush.msra.mxu0 %v1149
        %v1151 = vand.u32 %v939, 4294901760
        %1152 = vmatpush.msra.mxu0 %v1151
        %v1153 = vand.u32 %v938, 4294901760
        %1154 = vmatpush.msra.mxu0 %v1153
        %v1155 = vand.u32 %v937, 4294901760
        %1156 = vmatpush.msra.mxu0 %v1155
        %v1157 = vand.u32 %v936, 4294901760
        %1158 = vmatpush.msra.mxu0 %v1157
        %v1159 = vand.u32 %v935, 4294901760
        %1160 = vmatpush.msra.mxu0 %v1159
        %v1161 = vand.u32 %v934, 4294901760
        %1162 = vmatpush.msra.mxu0 %v1161
        %v1163 = vand.u32 %v933, 4294901760
        %1164 = vmatpush.msra.mxu0 %v1163
        %v1165 = vand.u32 %v932, 4294901760
        %1166 = vmatpush.msra.mxu0 %v1165
        %v1167 = vand.u32 %v931, 4294901760
        %1168 = vmatpush.msra.mxu0 %v1167
        %v1169 = vand.u32 %v930, 4294901760
        %1170 = vmatpush.msra.mxu0 %v1169
        %v1171 = vand.u32 %v929, 4294901760
        %1172 = vmatpush.msra.mxu0 %v1171
        %v1173 = vand.u32 %v927, 4294901760
        %v1174 = vsub.f32 %v927, %v1173
        %v1175 = vand.u32 %v1174, 4294901760
        %1176 = vmatmul.f32.gmra.mxu0 %v1175
        %v1177 = vpop.f32.mrf.mxu0
        %v1178 = vadd.f32 %v1139, %v1177
        %1179 = vdwg.mxu0
        %v1180 = vand.u32 %v944, 4294901760
        %v1181 = vsub.f32 %v944, %v1180
        %v1182 = vand.u32 %v1181, 4294901760
        %1183 = vmatpush.msra.mxu0 %v1182
        %v1184 = vand.u32 %v943, 4294901760
        %v1185 = vsub.f32 %v943, %v1184
        %v1186 = vand.u32 %v1185, 4294901760
        %1187 = vmatpush.msra.mxu0 %v1186
        %v1188 = vand.u32 %v942, 4294901760
        %v1189 = vsub.f32 %v942, %v1188
        %v1190 = vand.u32 %v1189, 4294901760
        %1191 = vmatpush.msra.mxu0 %v1190
        %v1192 = vand.u32 %v941, 4294901760
        %v1193 = vsub.f32 %v941, %v1192
        %v1194 = vand.u32 %v1193, 4294901760
        %1195 = vmatpush.msra.mxu0 %v1194
        %v1196 = vand.u32 %v940, 4294901760
        %v1197 = vsub.f32 %v940, %v1196
        %v1198 = vand.u32 %v1197, 4294901760
        %1199 = vmatpush.msra.mxu0 %v1198
        %v1200 = vand.u32 %v939, 4294901760
        %v1201 = vsub.f32 %v939, %v1200
        %v1202 = vand.u32 %v1201, 4294901760
        %1203 = vmatpush.msra.mxu0 %v1202
        %v1204 = vand.u32 %v938, 4294901760
        %v1205 = vsub.f32 %v938, %v1204
        %v1206 = vand.u32 %v1205, 4294901760
        %1207 = vmatpush.msra.mxu0 %v1206
        %v1208 = vand.u32 %v937, 4294901760
        %v1209 = vsub.f32 %v937, %v1208
        %v1210 = vand.u32 %v1209, 4294901760
        %1211 = vmatpush.msra.mxu0 %v1210
        %v1212 = vand.u32 %v936, 4294901760
        %v1213 = vsub.f32 %v936, %v1212
        %v1214 = vand.u32 %v1213, 4294901760
        %1215 = vmatpush.msra.mxu0 %v1214
        %v1216 = vand.u32 %v935, 4294901760
        %v1217 = vsub.f32 %v935, %v1216
        %v1218 = vand.u32 %v1217, 4294901760
        %1219 = vmatpush.msra.mxu0 %v1218
        %v1220 = vand.u32 %v934, 4294901760
        %v1221 = vsub.f32 %v934, %v1220
        %v1222 = vand.u32 %v1221, 4294901760
        %1223 = vmatpush.msra.mxu0 %v1222
        %v1224 = vand.u32 %v933, 4294901760
        %v1225 = vsub.f32 %v933, %v1224
        %v1226 = vand.u32 %v1225, 4294901760
        %1227 = vmatpush.msra.mxu0 %v1226
        %v1228 = vand.u32 %v932, 4294901760
        %v1229 = vsub.f32 %v932, %v1228
        %v1230 = vand.u32 %v1229, 4294901760
        %1231 = vmatpush.msra.mxu0 %v1230
        %v1232 = vand.u32 %v931, 4294901760
        %v1233 = vsub.f32 %v931, %v1232
        %v1234 = vand.u32 %v1233, 4294901760
        %1235 = vmatpush.msra.mxu0 %v1234
        %v1236 = vand.u32 %v930, 4294901760
        %v1237 = vsub.f32 %v930, %v1236
        %v1238 = vand.u32 %v1237, 4294901760
        %1239 = vmatpush.msra.mxu0 %v1238
        %v1240 = vand.u32 %v929, 4294901760
        %v1241 = vsub.f32 %v929, %v1240
        %v1242 = vand.u32 %v1241, 4294901760
        %1243 = vmatpush.msra.mxu0 %v1242
        %v1244 = vand.u32 %v927, 4294901760
        %1245 = vmatmul.f32.gmra.mxu0 %v1244
        %v1246 = vpop.f32.mrf.mxu0
        %v1247 = vadd.f32 %v1178, %v1246
        %1248 = vdwg.mxu0
        %v1249 = vand.u32 %v944, 4294901760
        %1250 = vmatpush.msra.mxu0 %v1249
        %v1251 = vand.u32 %v943, 4294901760
        %1252 = vmatpush.msra.mxu0 %v1251
        %v1253 = vand.u32 %v942, 4294901760
        %1254 = vmatpush.msra.mxu0 %v1253
        %v1255 = vand.u32 %v941, 4294901760
        %1256 = vmatpush.msra.mxu0 %v1255
        %v1257 = vand.u32 %v940, 4294901760
        %1258 = vmatpush.msra.mxu0 %v1257
        %v1259 = vand.u32 %v939, 4294901760
        %1260 = vmatpush.msra.mxu0 %v1259
        %v1261 = vand.u32 %v938, 4294901760
        %1262 = vmatpush.msra.mxu0 %v1261
        %v1263 = vand.u32 %v937, 4294901760
        %1264 = vmatpush.msra.mxu0 %v1263
        %v1265 = vand.u32 %v936, 4294901760
        %1266 = vmatpush.msra.mxu0 %v1265
        %v1267 = vand.u32 %v935, 4294901760
        %1268 = vmatpush.msra.mxu0 %v1267
        %v1269 = vand.u32 %v934, 4294901760
        %1270 = vmatpush.msra.mxu0 %v1269
        %v1271 = vand.u32 %v933, 4294901760
        %1272 = vmatpush.msra.mxu0 %v1271
        %v1273 = vand.u32 %v932, 4294901760
        %1274 = vmatpush.msra.mxu0 %v1273
        %v1275 = vand.u32 %v931, 4294901760
        %1276 = vmatpush.msra.mxu0 %v1275
        %v1277 = vand.u32 %v930, 4294901760
        %1278 = vmatpush.msra.mxu0 %v1277
        %v1279 = vand.u32 %v929, 4294901760
        %1280 = vmatpush.msra.mxu0 %v1279
        %v1281 = vand.u32 %v927, 4294901760
        %1282 = vmatmul.f32.gmra.mxu0 %v1281
        %v1283 = vpop.f32.mrf.mxu0
        %v1284 = vadd.f32 %v1247, %v1283
        %1285 = vdwg.mxu0
        %v1286 = vadd.f32 %v924, %v1284
        %s1287 = sadd.s32 %s199, 3
        %s1288 = scalar_lea.vmem [#allocation2], %s1287
        %v1289 = vld [vmem:[%s1288] sm:$0xff]
        %s1290 = scalar_lea.vmem [#allocation6], 384
        %v1291 = vld [vmem:[%s1290] sm:$0xff]
        %v1292 = vld [vmem:[%s1290 + $0x8] sm:$0xff]
        %v1293 = vld [vmem:[%s1290 + $0x10] sm:$0xff]
        %v1294 = vld [vmem:[%s1290 + $0x18] sm:$0xff]
        %v1295 = vld [vmem:[%s1290 + $0x20] sm:$0xff]
        %v1296 = vld [vmem:[%s1290 + $0x28] sm:$0xff]
        %v1297 = vld [vmem:[%s1290 + $0x30] sm:$0xff]
        %v1298 = vld [vmem:[%s1290 + $0x38] sm:$0xff]
        %v1299 = vld [vmem:[%s1290 + $0x40] sm:$0xff]
        %v1300 = vld [vmem:[%s1290 + $0x48] sm:$0xff]
        %v1301 = vld [vmem:[%s1290 + $0x50] sm:$0xff]
        %v1302 = vld [vmem:[%s1290 + $0x58] sm:$0xff]
        %v1303 = vld [vmem:[%s1290 + $0x60] sm:$0xff]
        %v1304 = vld [vmem:[%s1290 + $0x68] sm:$0xff]
        %v1305 = vld [vmem:[%s1290 + $0x70] sm:$0xff]
        %v1306 = vld [vmem:[%s1290 + $0x78] sm:$0xff]
        %v1307 = vand.u32 %v1306, 4294901760
        %1308 = vmatpush.msra.mxu0 %v1307
        %v1309 = vand.u32 %v1305, 4294901760
        %1310 = vmatpush.msra.mxu0 %v1309
        %v1311 = vand.u32 %v1304, 4294901760
        %1312 = vmatpush.msra.mxu0 %v1311
        %v1313 = vand.u32 %v1303, 4294901760
        %1314 = vmatpush.msra.mxu0 %v1313
        %v1315 = vand.u32 %v1302, 4294901760
        %1316 = vmatpush.msra.mxu0 %v1315
        %v1317 = vand.u32 %v1301, 4294901760
        %1318 = vmatpush.msra.mxu0 %v1317
        %v1319 = vand.u32 %v1300, 4294901760
        %1320 = vmatpush.msra.mxu0 %v1319
        %v1321 = vand.u32 %v1299, 4294901760
        %1322 = vmatpush.msra.mxu0 %v1321
        %v1323 = vand.u32 %v1298, 4294901760
        %1324 = vmatpush.msra.mxu0 %v1323
        %v1325 = vand.u32 %v1297, 4294901760
        %1326 = vmatpush.msra.mxu0 %v1325
        %v1327 = vand.u32 %v1296, 4294901760
        %1328 = vmatpush.msra.mxu0 %v1327
        %v1329 = vand.u32 %v1295, 4294901760
        %1330 = vmatpush.msra.mxu0 %v1329
        %v1331 = vand.u32 %v1294, 4294901760
        %1332 = vmatpush.msra.mxu0 %v1331
        %v1333 = vand.u32 %v1293, 4294901760
        %1334 = vmatpush.msra.mxu0 %v1333
        %v1335 = vand.u32 %v1292, 4294901760
        %1336 = vmatpush.msra.mxu0 %v1335
        %v1337 = vand.u32 %v1291, 4294901760
        %1338 = vmatpush.msra.mxu0 %v1337
        %v1339 = vand.u32 %v1289, 4294901760
        %v1340 = vsub.f32 %v1289, %v1339
        %v1341 = vand.u32 %v1340, 4294901760
        %v1342 = vsub.f32 %v1340, %v1341
        %v1343 = vand.u32 %v1342, 4294901760
        %1344 = vmatmul.f32.gmra.mxu0 %v1343
        %v1345 = vpop.f32.mrf.mxu0
        %v1346 = vadd.f32 0.0, %v1345
        %1347 = vdwg.mxu0
        %v1348 = vand.u32 %v1306, 4294901760
        %v1349 = vsub.f32 %v1306, %v1348
        %v1350 = vand.u32 %v1349, 4294901760
        %v1351 = vsub.f32 %v1349, %v1350
        %v1352 = vand.u32 %v1351, 4294901760
        %1353 = vmatpush.msra.mxu0 %v1352
        %v1354 = vand.u32 %v1305, 4294901760
        %v1355 = vsub.f32 %v1305, %v1354
        %v1356 = vand.u32 %v1355, 4294901760
        %v1357 = vsub.f32 %v1355, %v1356
        %v1358 = vand.u32 %v1357, 4294901760
        %1359 = vmatpush.msra.mxu0 %v1358
        %v1360 = vand.u32 %v1304, 4294901760
        %v1361 = vsub.f32 %v1304, %v1360
        %v1362 = vand.u32 %v1361, 4294901760
        %v1363 = vsub.f32 %v1361, %v1362
        %v1364 = vand.u32 %v1363, 4294901760
        %1365 = vmatpush.msra.mxu0 %v1364
        %v1366 = vand.u32 %v1303, 4294901760
        %v1367 = vsub.f32 %v1303, %v1366
        %v1368 = vand.u32 %v1367, 4294901760
        %v1369 = vsub.f32 %v1367, %v1368
        %v1370 = vand.u32 %v1369, 4294901760
        %1371 = vmatpush.msra.mxu0 %v1370
        %v1372 = vand.u32 %v1302, 4294901760
        %v1373 = vsub.f32 %v1302, %v1372
        %v1374 = vand.u32 %v1373, 4294901760
        %v1375 = vsub.f32 %v1373, %v1374
        %v1376 = vand.u32 %v1375, 4294901760
        %1377 = vmatpush.msra.mxu0 %v1376
        %v1378 = vand.u32 %v1301, 4294901760
        %v1379 = vsub.f32 %v1301, %v1378
        %v1380 = vand.u32 %v1379, 4294901760
        %v1381 = vsub.f32 %v1379, %v1380
        %v1382 = vand.u32 %v1381, 4294901760
        %1383 = vmatpush.msra.mxu0 %v1382
        %v1384 = vand.u32 %v1300, 4294901760
        %v1385 = vsub.f32 %v1300, %v1384
        %v1386 = vand.u32 %v1385, 4294901760
        %v1387 = vsub.f32 %v1385, %v1386
        %v1388 = vand.u32 %v1387, 4294901760
        %1389 = vmatpush.msra.mxu0 %v1388
        %v1390 = vand.u32 %v1299, 4294901760
        %v1391 = vsub.f32 %v1299, %v1390
        %v1392 = vand.u32 %v1391, 4294901760
        %v1393 = vsub.f32 %v1391, %v1392
        %v1394 = vand.u32 %v1393, 4294901760
        %1395 = vmatpush.msra.mxu0 %v1394
        %v1396 = vand.u32 %v1298, 4294901760
        %v1397 = vsub.f32 %v1298, %v1396
        %v1398 = vand.u32 %v1397, 4294901760
        %v1399 = vsub.f32 %v1397, %v1398
        %v1400 = vand.u32 %v1399, 4294901760
        %1401 = vmatpush.msra.mxu0 %v1400
        %v1402 = vand.u32 %v1297, 4294901760
        %v1403 = vsub.f32 %v1297, %v1402
        %v1404 = vand.u32 %v1403, 4294901760
        %v1405 = vsub.f32 %v1403, %v1404
        %v1406 = vand.u32 %v1405, 4294901760
        %1407 = vmatpush.msra.mxu0 %v1406
        %v1408 = vand.u32 %v1296, 4294901760
        %v1409 = vsub.f32 %v1296, %v1408
        %v1410 = vand.u32 %v1409, 4294901760
        %v1411 = vsub.f32 %v1409, %v1410
        %v1412 = vand.u32 %v1411, 4294901760
        %1413 = vmatpush.msra.mxu0 %v1412
        %v1414 = vand.u32 %v1295, 4294901760
        %v1415 = vsub.f32 %v1295, %v1414
        %v1416 = vand.u32 %v1415, 4294901760
        %v1417 = vsub.f32 %v1415, %v1416
        %v1418 = vand.u32 %v1417, 4294901760
        %1419 = vmatpush.msra.mxu0 %v1418
        %v1420 = vand.u32 %v1294, 4294901760
        %v1421 = vsub.f32 %v1294, %v1420
        %v1422 = vand.u32 %v1421, 4294901760
        %v1423 = vsub.f32 %v1421, %v1422
        %v1424 = vand.u32 %v1423, 4294901760
        %1425 = vmatpush.msra.mxu0 %v1424
        %v1426 = vand.u32 %v1293, 4294901760
        %v1427 = vsub.f32 %v1293, %v1426
        %v1428 = vand.u32 %v1427, 4294901760
        %v1429 = vsub.f32 %v1427, %v1428
        %v1430 = vand.u32 %v1429, 4294901760
        %1431 = vmatpush.msra.mxu0 %v1430
        %v1432 = vand.u32 %v1292, 4294901760
        %v1433 = vsub.f32 %v1292, %v1432
        %v1434 = vand.u32 %v1433, 4294901760
        %v1435 = vsub.f32 %v1433, %v1434
        %v1436 = vand.u32 %v1435, 4294901760
        %1437 = vmatpush.msra.mxu0 %v1436
        %v1438 = vand.u32 %v1291, 4294901760
        %v1439 = vsub.f32 %v1291, %v1438
        %v1440 = vand.u32 %v1439, 4294901760
        %v1441 = vsub.f32 %v1439, %v1440
        %v1442 = vand.u32 %v1441, 4294901760
        %1443 = vmatpush.msra.mxu0 %v1442
        %v1444 = vand.u32 %v1289, 4294901760
        %1445 = vmatmul.f32.gmra.mxu0 %v1444
        %v1446 = vpop.f32.mrf.mxu0
        %v1447 = vadd.f32 %v1346, %v1446
        %1448 = vdwg.mxu0
        %v1449 = vand.u32 %v1306, 4294901760
        %v1450 = vsub.f32 %v1306, %v1449
        %1451 = vmatpush.msra.mxu0 %v1450
        %v1452 = vand.u32 %v1305, 4294901760
        %v1453 = vsub.f32 %v1305, %v1452
        %1454 = vmatpush.msra.mxu0 %v1453
        %v1455 = vand.u32 %v1304, 4294901760
        %v1456 = vsub.f32 %v1304, %v1455
        %1457 = vmatpush.msra.mxu0 %v1456
        %v1458 = vand.u32 %v1303, 4294901760
        %v1459 = vsub.f32 %v1303, %v1458
        %1460 = vmatpush.msra.mxu0 %v1459
        %v1461 = vand.u32 %v1302, 4294901760
        %v1462 = vsub.f32 %v1302, %v1461
        %1463 = vmatpush.msra.mxu0 %v1462
        %v1464 = vand.u32 %v1301, 4294901760
        %v1465 = vsub.f32 %v1301, %v1464
        %1466 = vmatpush.msra.mxu0 %v1465
        %v1467 = vand.u32 %v1300, 4294901760
        %v1468 = vsub.f32 %v1300, %v1467
        %1469 = vmatpush.msra.mxu0 %v1468
        %v1470 = vand.u32 %v1299, 4294901760
        %v1471 = vsub.f32 %v1299, %v1470
        %1472 = vmatpush.msra.mxu0 %v1471
        %v1473 = vand.u32 %v1298, 4294901760
        %v1474 = vsub.f32 %v1298, %v1473
        %1475 = vmatpush.msra.mxu0 %v1474
        %v1476 = vand.u32 %v1297, 4294901760
        %v1477 = vsub.f32 %v1297, %v1476
        %1478 = vmatpush.msra.mxu0 %v1477
        %v1479 = vand.u32 %v1296, 4294901760
        %v1480 = vsub.f32 %v1296, %v1479
        %1481 = vmatpush.msra.mxu0 %v1480
        %v1482 = vand.u32 %v1295, 4294901760
        %v1483 = vsub.f32 %v1295, %v1482
        %1484 = vmatpush.msra.mxu0 %v1483
        %v1485 = vand.u32 %v1294, 4294901760
        %v1486 = vsub.f32 %v1294, %v1485
        %1487 = vmatpush.msra.mxu0 %v1486
        %v1488 = vand.u32 %v1293, 4294901760
        %v1489 = vsub.f32 %v1293, %v1488
        %1490 = vmatpush.msra.mxu0 %v1489
        %v1491 = vand.u32 %v1292, 4294901760
        %v1492 = vsub.f32 %v1292, %v1491
        %1493 = vmatpush.msra.mxu0 %v1492
        %v1494 = vand.u32 %v1291, 4294901760
        %v1495 = vsub.f32 %v1291, %v1494
        %1496 = vmatpush.msra.mxu0 %v1495
        %v1497 = vand.u32 %v1289, 4294901760
        %v1498 = vsub.f32 %v1289, %v1497
        %1499 = vmatmul.f32.gmra.mxu0 %v1498
        %v1500 = vpop.f32.mrf.mxu0
        %v1501 = vadd.f32 %v1447, %v1500
        %1502 = vdwg.mxu0
        %v1503 = vand.u32 %v1306, 4294901760
        %1504 = vmatpush.msra.mxu0 %v1503
        %v1505 = vand.u32 %v1305, 4294901760
        %1506 = vmatpush.msra.mxu0 %v1505
        %v1507 = vand.u32 %v1304, 4294901760
        %1508 = vmatpush.msra.mxu0 %v1507
        %v1509 = vand.u32 %v1303, 4294901760
        %1510 = vmatpush.msra.mxu0 %v1509
        %v1511 = vand.u32 %v1302, 4294901760
        %1512 = vmatpush.msra.mxu0 %v1511
        %v1513 = vand.u32 %v1301, 4294901760
        %1514 = vmatpush.msra.mxu0 %v1513
        %v1515 = vand.u32 %v1300, 4294901760
        %1516 = vmatpush.msra.mxu0 %v1515
        %v1517 = vand.u32 %v1299, 4294901760
        %1518 = vmatpush.msra.mxu0 %v1517
        %v1519 = vand.u32 %v1298, 4294901760
        %1520 = vmatpush.msra.mxu0 %v1519
        %v1521 = vand.u32 %v1297, 4294901760
        %1522 = vmatpush.msra.mxu0 %v1521
        %v1523 = vand.u32 %v1296, 4294901760
        %1524 = vmatpush.msra.mxu0 %v1523
        %v1525 = vand.u32 %v1295, 4294901760
        %1526 = vmatpush.msra.mxu0 %v1525
        %v1527 = vand.u32 %v1294, 4294901760
        %1528 = vmatpush.msra.mxu0 %v1527
        %v1529 = vand.u32 %v1293, 4294901760
        %1530 = vmatpush.msra.mxu0 %v1529
        %v1531 = vand.u32 %v1292, 4294901760
        %1532 = vmatpush.msra.mxu0 %v1531
        %v1533 = vand.u32 %v1291, 4294901760
        %1534 = vmatpush.msra.mxu0 %v1533
        %v1535 = vand.u32 %v1289, 4294901760
        %v1536 = vsub.f32 %v1289, %v1535
        %v1537 = vand.u32 %v1536, 4294901760
        %1538 = vmatmul.f32.gmra.mxu0 %v1537
        %v1539 = vpop.f32.mrf.mxu0
        %v1540 = vadd.f32 %v1501, %v1539
        %1541 = vdwg.mxu0
        %v1542 = vand.u32 %v1306, 4294901760
        %v1543 = vsub.f32 %v1306, %v1542
        %v1544 = vand.u32 %v1543, 4294901760
        %1545 = vmatpush.msra.mxu0 %v1544
        %v1546 = vand.u32 %v1305, 4294901760
        %v1547 = vsub.f32 %v1305, %v1546
        %v1548 = vand.u32 %v1547, 4294901760
        %1549 = vmatpush.msra.mxu0 %v1548
        %v1550 = vand.u32 %v1304, 4294901760
        %v1551 = vsub.f32 %v1304, %v1550
        %v1552 = vand.u32 %v1551, 4294901760
        %1553 = vmatpush.msra.mxu0 %v1552
        %v1554 = vand.u32 %v1303, 4294901760
        %v1555 = vsub.f32 %v1303, %v1554
        %v1556 = vand.u32 %v1555, 4294901760
        %1557 = vmatpush.msra.mxu0 %v1556
        %v1558 = vand.u32 %v1302, 4294901760
        %v1559 = vsub.f32 %v1302, %v1558
        %v1560 = vand.u32 %v1559, 4294901760
        %1561 = vmatpush.msra.mxu0 %v1560
        %v1562 = vand.u32 %v1301, 4294901760
        %v1563 = vsub.f32 %v1301, %v1562
        %v1564 = vand.u32 %v1563, 4294901760
        %1565 = vmatpush.msra.mxu0 %v1564
        %v1566 = vand.u32 %v1300, 4294901760
        %v1567 = vsub.f32 %v1300, %v1566
        %v1568 = vand.u32 %v1567, 4294901760
        %1569 = vmatpush.msra.mxu0 %v1568
        %v1570 = vand.u32 %v1299, 4294901760
        %v1571 = vsub.f32 %v1299, %v1570
        %v1572 = vand.u32 %v1571, 4294901760
        %1573 = vmatpush.msra.mxu0 %v1572
        %v1574 = vand.u32 %v1298, 4294901760
        %v1575 = vsub.f32 %v1298, %v1574
        %v1576 = vand.u32 %v1575, 4294901760
        %1577 = vmatpush.msra.mxu0 %v1576
        %v1578 = vand.u32 %v1297, 4294901760
        %v1579 = vsub.f32 %v1297, %v1578
        %v1580 = vand.u32 %v1579, 4294901760
        %1581 = vmatpush.msra.mxu0 %v1580
        %v1582 = vand.u32 %v1296, 4294901760
        %v1583 = vsub.f32 %v1296, %v1582
        %v1584 = vand.u32 %v1583, 4294901760
        %1585 = vmatpush.msra.mxu0 %v1584
        %v1586 = vand.u32 %v1295, 4294901760
        %v1587 = vsub.f32 %v1295, %v1586
        %v1588 = vand.u32 %v1587, 4294901760
        %1589 = vmatpush.msra.mxu0 %v1588
        %v1590 = vand.u32 %v1294, 4294901760
        %v1591 = vsub.f32 %v1294, %v1590
        %v1592 = vand.u32 %v1591, 4294901760
        %1593 = vmatpush.msra.mxu0 %v1592
        %v1594 = vand.u32 %v1293, 4294901760
        %v1595 = vsub.f32 %v1293, %v1594
        %v1596 = vand.u32 %v1595, 4294901760
        %1597 = vmatpush.msra.mxu0 %v1596
        %v1598 = vand.u32 %v1292, 4294901760
        %v1599 = vsub.f32 %v1292, %v1598
        %v1600 = vand.u32 %v1599, 4294901760
        %1601 = vmatpush.msra.mxu0 %v1600
        %v1602 = vand.u32 %v1291, 4294901760
        %v1603 = vsub.f32 %v1291, %v1602
        %v1604 = vand.u32 %v1603, 4294901760
        %1605 = vmatpush.msra.mxu0 %v1604
        %v1606 = vand.u32 %v1289, 4294901760
        %1607 = vmatmul.f32.gmra.mxu0 %v1606
        %v1608 = vpop.f32.mrf.mxu0
        %v1609 = vadd.f32 %v1540, %v1608
        %1610 = vdwg.mxu0
        %v1611 = vand.u32 %v1306, 4294901760
        %1612 = vmatpush.msra.mxu0 %v1611
        %v1613 = vand.u32 %v1305, 4294901760
        %1614 = vmatpush.msra.mxu0 %v1613
        %v1615 = vand.u32 %v1304, 4294901760
        %1616 = vmatpush.msra.mxu0 %v1615
        %v1617 = vand.u32 %v1303, 4294901760
        %1618 = vmatpush.msra.mxu0 %v1617
        %v1619 = vand.u32 %v1302, 4294901760
        %1620 = vmatpush.msra.mxu0 %v1619
        %v1621 = vand.u32 %v1301, 4294901760
        %1622 = vmatpush.msra.mxu0 %v1621
        %v1623 = vand.u32 %v1300, 4294901760
        %1624 = vmatpush.msra.mxu0 %v1623
        %v1625 = vand.u32 %v1299, 4294901760
        %1626 = vmatpush.msra.mxu0 %v1625
        %v1627 = vand.u32 %v1298, 4294901760
        %1628 = vmatpush.msra.mxu0 %v1627
        %v1629 = vand.u32 %v1297, 4294901760
        %1630 = vmatpush.msra.mxu0 %v1629
        %v1631 = vand.u32 %v1296, 4294901760
        %1632 = vmatpush.msra.mxu0 %v1631
        %v1633 = vand.u32 %v1295, 4294901760
        %1634 = vmatpush.msra.mxu0 %v1633
        %v1635 = vand.u32 %v1294, 4294901760
        %1636 = vmatpush.msra.mxu0 %v1635
        %v1637 = vand.u32 %v1293, 4294901760
        %1638 = vmatpush.msra.mxu0 %v1637
        %v1639 = vand.u32 %v1292, 4294901760
        %1640 = vmatpush.msra.mxu0 %v1639
        %v1641 = vand.u32 %v1291, 4294901760
        %1642 = vmatpush.msra.mxu0 %v1641
        %v1643 = vand.u32 %v1289, 4294901760
        %1644 = vmatmul.f32.gmra.mxu0 %v1643
        %v1645 = vpop.f32.mrf.mxu0
        %v1646 = vadd.f32 %v1609, %v1645
        %1647 = vdwg.mxu0
        %v1648 = vadd.f32 %v1286, %v1646
        %s1649 = sadd.s32 %s199, 4
        %s1650 = scalar_lea.vmem [#allocation2], %s1649
        %v1651 = vld [vmem:[%s1650] sm:$0xff]
        %s1652 = scalar_lea.vmem [#allocation6], 512
        %v1653 = vld [vmem:[%s1652] sm:$0xff]
        %v1654 = vld [vmem:[%s1652 + $0x8] sm:$0xff]
        %v1655 = vld [vmem:[%s1652 + $0x10] sm:$0xff]
        %v1656 = vld [vmem:[%s1652 + $0x18] sm:$0xff]
        %v1657 = vld [vmem:[%s1652 + $0x20] sm:$0xff]
        %v1658 = vld [vmem:[%s1652 + $0x28] sm:$0xff]
        %v1659 = vld [vmem:[%s1652 + $0x30] sm:$0xff]
        %v1660 = vld [vmem:[%s1652 + $0x38] sm:$0xff]
        %v1661 = vld [vmem:[%s1652 + $0x40] sm:$0xff]
        %v1662 = vld [vmem:[%s1652 + $0x48] sm:$0xff]
        %v1663 = vld [vmem:[%s1652 + $0x50] sm:$0xff]
        %v1664 = vld [vmem:[%s1652 + $0x58] sm:$0xff]
        %v1665 = vld [vmem:[%s1652 + $0x60] sm:$0xff]
        %v1666 = vld [vmem:[%s1652 + $0x68] sm:$0xff]
        %v1667 = vld [vmem:[%s1652 + $0x70] sm:$0xff]
        %v1668 = vld [vmem:[%s1652 + $0x78] sm:$0xff]
        %v1669 = vand.u32 %v1668, 4294901760
        %1670 = vmatpush.msra.mxu0 %v1669
        %v1671 = vand.u32 %v1667, 4294901760
        %1672 = vmatpush.msra.mxu0 %v1671
        %v1673 = vand.u32 %v1666, 4294901760
        %1674 = vmatpush.msra.mxu0 %v1673
        %v1675 = vand.u32 %v1665, 4294901760
        %1676 = vmatpush.msra.mxu0 %v1675
        %v1677 = vand.u32 %v1664, 4294901760
        %1678 = vmatpush.msra.mxu0 %v1677
        %v1679 = vand.u32 %v1663, 4294901760
        %1680 = vmatpush.msra.mxu0 %v1679
        %v1681 = vand.u32 %v1662, 4294901760
        %1682 = vmatpush.msra.mxu0 %v1681
        %v1683 = vand.u32 %v1661, 4294901760
        %1684 = vmatpush.msra.mxu0 %v1683
        %v1685 = vand.u32 %v1660, 4294901760
        %1686 = vmatpush.msra.mxu0 %v1685
        %v1687 = vand.u32 %v1659, 4294901760
        %1688 = vmatpush.msra.mxu0 %v1687
        %v1689 = vand.u32 %v1658, 4294901760
        %1690 = vmatpush.msra.mxu0 %v1689
        %v1691 = vand.u32 %v1657, 4294901760
        %1692 = vmatpush.msra.mxu0 %v1691
        %v1693 = vand.u32 %v1656, 4294901760
        %1694 = vmatpush.msra.mxu0 %v1693
        %v1695 = vand.u32 %v1655, 4294901760
        %1696 = vmatpush.msra.mxu0 %v1695
        %v1697 = vand.u32 %v1654, 4294901760
        %1698 = vmatpush.msra.mxu0 %v1697
        %v1699 = vand.u32 %v1653, 4294901760
        %1700 = vmatpush.msra.mxu0 %v1699
        %v1701 = vand.u32 %v1651, 4294901760
        %v1702 = vsub.f32 %v1651, %v1701
        %v1703 = vand.u32 %v1702, 4294901760
        %v1704 = vsub.f32 %v1702, %v1703
        %v1705 = vand.u32 %v1704, 4294901760
        %1706 = vmatmul.f32.gmra.mxu0 %v1705
        %v1707 = vpop.f32.mrf.mxu0
        %v1708 = vadd.f32 0.0, %v1707
        %1709 = vdwg.mxu0
        %v1710 = vand.u32 %v1668, 4294901760
        %v1711 = vsub.f32 %v1668, %v1710
        %v1712 = vand.u32 %v1711, 4294901760
        %v1713 = vsub.f32 %v1711, %v1712
        %v1714 = vand.u32 %v1713, 4294901760
        %1715 = vmatpush.msra.mxu0 %v1714
        %v1716 = vand.u32 %v1667, 4294901760
        %v1717 = vsub.f32 %v1667, %v1716
        %v1718 = vand.u32 %v1717, 4294901760
        %v1719 = vsub.f32 %v1717, %v1718
        %v1720 = vand.u32 %v1719, 4294901760
        %1721 = vmatpush.msra.mxu0 %v1720
        %v1722 = vand.u32 %v1666, 4294901760
        %v1723 = vsub.f32 %v1666, %v1722
        %v1724 = vand.u32 %v1723, 4294901760
        %v1725 = vsub.f32 %v1723, %v1724
        %v1726 = vand.u32 %v1725, 4294901760
        %1727 = vmatpush.msra.mxu0 %v1726
        %v1728 = vand.u32 %v1665, 4294901760
        %v1729 = vsub.f32 %v1665, %v1728
        %v1730 = vand.u32 %v1729, 4294901760
        %v1731 = vsub.f32 %v1729, %v1730
        %v1732 = vand.u32 %v1731, 4294901760
        %1733 = vmatpush.msra.mxu0 %v1732
        %v1734 = vand.u32 %v1664, 4294901760
        %v1735 = vsub.f32 %v1664, %v1734
        %v1736 = vand.u32 %v1735, 4294901760
        %v1737 = vsub.f32 %v1735, %v1736
        %v1738 = vand.u32 %v1737, 4294901760
        %1739 = vmatpush.msra.mxu0 %v1738
        %v1740 = vand.u32 %v1663, 4294901760
        %v1741 = vsub.f32 %v1663, %v1740
        %v1742 = vand.u32 %v1741, 4294901760
        %v1743 = vsub.f32 %v1741, %v1742
        %v1744 = vand.u32 %v1743, 4294901760
        %1745 = vmatpush.msra.mxu0 %v1744
        %v1746 = vand.u32 %v1662, 4294901760
        %v1747 = vsub.f32 %v1662, %v1746
        %v1748 = vand.u32 %v1747, 4294901760
        %v1749 = vsub.f32 %v1747, %v1748
        %v1750 = vand.u32 %v1749, 4294901760
        %1751 = vmatpush.msra.mxu0 %v1750
        %v1752 = vand.u32 %v1661, 4294901760
        %v1753 = vsub.f32 %v1661, %v1752
        %v1754 = vand.u32 %v1753, 4294901760
        %v1755 = vsub.f32 %v1753, %v1754
        %v1756 = vand.u32 %v1755, 4294901760
        %1757 = vmatpush.msra.mxu0 %v1756
        %v1758 = vand.u32 %v1660, 4294901760
        %v1759 = vsub.f32 %v1660, %v1758
        %v1760 = vand.u32 %v1759, 4294901760
        %v1761 = vsub.f32 %v1759, %v1760
        %v1762 = vand.u32 %v1761, 4294901760
        %1763 = vmatpush.msra.mxu0 %v1762
        %v1764 = vand.u32 %v1659, 4294901760
        %v1765 = vsub.f32 %v1659, %v1764
        %v1766 = vand.u32 %v1765, 4294901760
        %v1767 = vsub.f32 %v1765, %v1766
        %v1768 = vand.u32 %v1767, 4294901760
        %1769 = vmatpush.msra.mxu0 %v1768
        %v1770 = vand.u32 %v1658, 4294901760
        %v1771 = vsub.f32 %v1658, %v1770
        %v1772 = vand.u32 %v1771, 4294901760
        %v1773 = vsub.f32 %v1771, %v1772
        %v1774 = vand.u32 %v1773, 4294901760
        %1775 = vmatpush.msra.mxu0 %v1774
        %v1776 = vand.u32 %v1657, 4294901760
        %v1777 = vsub.f32 %v1657, %v1776
        %v1778 = vand.u32 %v1777, 4294901760
        %v1779 = vsub.f32 %v1777, %v1778
        %v1780 = vand.u32 %v1779, 4294901760
        %1781 = vmatpush.msra.mxu0 %v1780
        %v1782 = vand.u32 %v1656, 4294901760
        %v1783 = vsub.f32 %v1656, %v1782
        %v1784 = vand.u32 %v1783, 4294901760
        %v1785 = vsub.f32 %v1783, %v1784
        %v1786 = vand.u32 %v1785, 4294901760
        %1787 = vmatpush.msra.mxu0 %v1786
        %v1788 = vand.u32 %v1655, 4294901760
        %v1789 = vsub.f32 %v1655, %v1788
        %v1790 = vand.u32 %v1789, 4294901760
        %v1791 = vsub.f32 %v1789, %v1790
        %v1792 = vand.u32 %v1791, 4294901760
        %1793 = vmatpush.msra.mxu0 %v1792
        %v1794 = vand.u32 %v1654, 4294901760
        %v1795 = vsub.f32 %v1654, %v1794
        %v1796 = vand.u32 %v1795, 4294901760
        %v1797 = vsub.f32 %v1795, %v1796
        %v1798 = vand.u32 %v1797, 4294901760
        %1799 = vmatpush.msra.mxu0 %v1798
        %v1800 = vand.u32 %v1653, 4294901760
        %v1801 = vsub.f32 %v1653, %v1800
        %v1802 = vand.u32 %v1801, 4294901760
        %v1803 = vsub.f32 %v1801, %v1802
        %v1804 = vand.u32 %v1803, 4294901760
        %1805 = vmatpush.msra.mxu0 %v1804
        %v1806 = vand.u32 %v1651, 4294901760
        %1807 = vmatmul.f32.gmra.mxu0 %v1806
        %v1808 = vpop.f32.mrf.mxu0
        %v1809 = vadd.f32 %v1708, %v1808
        %1810 = vdwg.mxu0
        %v1811 = vand.u32 %v1668, 4294901760
        %v1812 = vsub.f32 %v1668, %v1811
        %1813 = vmatpush.msra.mxu0 %v1812
        %v1814 = vand.u32 %v1667, 4294901760
        %v1815 = vsub.f32 %v1667, %v1814
        %1816 = vmatpush.msra.mxu0 %v1815
        %v1817 = vand.u32 %v1666, 4294901760
        %v1818 = vsub.f32 %v1666, %v1817
        %1819 = vmatpush.msra.mxu0 %v1818
        %v1820 = vand.u32 %v1665, 4294901760
        %v1821 = vsub.f32 %v1665, %v1820
        %1822 = vmatpush.msra.mxu0 %v1821
        %v1823 = vand.u32 %v1664, 4294901760
        %v1824 = vsub.f32 %v1664, %v1823
        %1825 = vmatpush.msra.mxu0 %v1824
        %v1826 = vand.u32 %v1663, 4294901760
        %v1827 = vsub.f32 %v1663, %v1826
        %1828 = vmatpush.msra.mxu0 %v1827
        %v1829 = vand.u32 %v1662, 4294901760
        %v1830 = vsub.f32 %v1662, %v1829
        %1831 = vmatpush.msra.mxu0 %v1830
        %v1832 = vand.u32 %v1661, 4294901760
        %v1833 = vsub.f32 %v1661, %v1832
        %1834 = vmatpush.msra.mxu0 %v1833
        %v1835 = vand.u32 %v1660, 4294901760
        %v1836 = vsub.f32 %v1660, %v1835
        %1837 = vmatpush.msra.mxu0 %v1836
        %v1838 = vand.u32 %v1659, 4294901760
        %v1839 = vsub.f32 %v1659, %v1838
        %1840 = vmatpush.msra.mxu0 %v1839
        %v1841 = vand.u32 %v1658, 4294901760
        %v1842 = vsub.f32 %v1658, %v1841
        %1843 = vmatpush.msra.mxu0 %v1842
        %v1844 = vand.u32 %v1657, 4294901760
        %v1845 = vsub.f32 %v1657, %v1844
        %1846 = vmatpush.msra.mxu0 %v1845
        %v1847 = vand.u32 %v1656, 4294901760
        %v1848 = vsub.f32 %v1656, %v1847
        %1849 = vmatpush.msra.mxu0 %v1848
        %v1850 = vand.u32 %v1655, 4294901760
        %v1851 = vsub.f32 %v1655, %v1850
        %1852 = vmatpush.msra.mxu0 %v1851
        %v1853 = vand.u32 %v1654, 4294901760
        %v1854 = vsub.f32 %v1654, %v1853
        %1855 = vmatpush.msra.mxu0 %v1854
        %v1856 = vand.u32 %v1653, 4294901760
        %v1857 = vsub.f32 %v1653, %v1856
        %1858 = vmatpush.msra.mxu0 %v1857
        %v1859 = vand.u32 %v1651, 4294901760
        %v1860 = vsub.f32 %v1651, %v1859
        %1861 = vmatmul.f32.gmra.mxu0 %v1860
        %v1862 = vpop.f32.mrf.mxu0
        %v1863 = vadd.f32 %v1809, %v1862
        %1864 = vdwg.mxu0
        %v1865 = vand.u32 %v1668, 4294901760
        %1866 = vmatpush.msra.mxu0 %v1865
        %v1867 = vand.u32 %v1667, 4294901760
        %1868 = vmatpush.msra.mxu0 %v1867
        %v1869 = vand.u32 %v1666, 4294901760
        %1870 = vmatpush.msra.mxu0 %v1869
        %v1871 = vand.u32 %v1665, 4294901760
        %1872 = vmatpush.msra.mxu0 %v1871
        %v1873 = vand.u32 %v1664, 4294901760
        %1874 = vmatpush.msra.mxu0 %v1873
        %v1875 = vand.u32 %v1663, 4294901760
        %1876 = vmatpush.msra.mxu0 %v1875
        %v1877 = vand.u32 %v1662, 4294901760
        %1878 = vmatpush.msra.mxu0 %v1877
        %v1879 = vand.u32 %v1661, 4294901760
        %1880 = vmatpush.msra.mxu0 %v1879
        %v1881 = vand.u32 %v1660, 4294901760
        %1882 = vmatpush.msra.mxu0 %v1881
        %v1883 = vand.u32 %v1659, 4294901760
        %1884 = vmatpush.msra.mxu0 %v1883
        %v1885 = vand.u32 %v1658, 4294901760
        %1886 = vmatpush.msra.mxu0 %v1885
        %v1887 = vand.u32 %v1657, 4294901760
        %1888 = vmatpush.msra.mxu0 %v1887
        %v1889 = vand.u32 %v1656, 4294901760
        %1890 = vmatpush.msra.mxu0 %v1889
        %v1891 = vand.u32 %v1655, 4294901760
        %1892 = vmatpush.msra.mxu0 %v1891
        %v1893 = vand.u32 %v1654, 4294901760
        %1894 = vmatpush.msra.mxu0 %v1893
        %v1895 = vand.u32 %v1653, 4294901760
        %1896 = vmatpush.msra.mxu0 %v1895
        %v1897 = vand.u32 %v1651, 4294901760
        %v1898 = vsub.f32 %v1651, %v1897
        %v1899 = vand.u32 %v1898, 4294901760
        %1900 = vmatmul.f32.gmra.mxu0 %v1899
        %v1901 = vpop.f32.mrf.mxu0
        %v1902 = vadd.f32 %v1863, %v1901
        %1903 = vdwg.mxu0
        %v1904 = vand.u32 %v1668, 4294901760
        %v1905 = vsub.f32 %v1668, %v1904
        %v1906 = vand.u32 %v1905, 4294901760
        %1907 = vmatpush.msra.mxu0 %v1906
        %v1908 = vand.u32 %v1667, 4294901760
        %v1909 = vsub.f32 %v1667, %v1908
        %v1910 = vand.u32 %v1909, 4294901760
        %1911 = vmatpush.msra.mxu0 %v1910
        %v1912 = vand.u32 %v1666, 4294901760
        %v1913 = vsub.f32 %v1666, %v1912
        %v1914 = vand.u32 %v1913, 4294901760
        %1915 = vmatpush.msra.mxu0 %v1914
        %v1916 = vand.u32 %v1665, 4294901760
        %v1917 = vsub.f32 %v1665, %v1916
        %v1918 = vand.u32 %v1917, 4294901760
        %1919 = vmatpush.msra.mxu0 %v1918
        %v1920 = vand.u32 %v1664, 4294901760
        %v1921 = vsub.f32 %v1664, %v1920
        %v1922 = vand.u32 %v1921, 4294901760
        %1923 = vmatpush.msra.mxu0 %v1922
        %v1924 = vand.u32 %v1663, 4294901760
        %v1925 = vsub.f32 %v1663, %v1924
        %v1926 = vand.u32 %v1925, 4294901760
        %1927 = vmatpush.msra.mxu0 %v1926
        %v1928 = vand.u32 %v1662, 4294901760
        %v1929 = vsub.f32 %v1662, %v1928
        %v1930 = vand.u32 %v1929, 4294901760
        %1931 = vmatpush.msra.mxu0 %v1930
        %v1932 = vand.u32 %v1661, 4294901760
        %v1933 = vsub.f32 %v1661, %v1932
        %v1934 = vand.u32 %v1933, 4294901760
        %1935 = vmatpush.msra.mxu0 %v1934
        %v1936 = vand.u32 %v1660, 4294901760
        %v1937 = vsub.f32 %v1660, %v1936
        %v1938 = vand.u32 %v1937, 4294901760
        %1939 = vmatpush.msra.mxu0 %v1938
        %v1940 = vand.u32 %v1659, 4294901760
        %v1941 = vsub.f32 %v1659, %v1940
        %v1942 = vand.u32 %v1941, 4294901760
        %1943 = vmatpush.msra.mxu0 %v1942
        %v1944 = vand.u32 %v1658, 4294901760
        %v1945 = vsub.f32 %v1658, %v1944
        %v1946 = vand.u32 %v1945, 4294901760
        %1947 = vmatpush.msra.mxu0 %v1946
        %v1948 = vand.u32 %v1657, 4294901760
        %v1949 = vsub.f32 %v1657, %v1948
        %v1950 = vand.u32 %v1949, 4294901760
        %1951 = vmatpush.msra.mxu0 %v1950
        %v1952 = vand.u32 %v1656, 4294901760
        %v1953 = vsub.f32 %v1656, %v1952
        %v1954 = vand.u32 %v1953, 4294901760
        %1955 = vmatpush.msra.mxu0 %v1954
        %v1956 = vand.u32 %v1655, 4294901760
        %v1957 = vsub.f32 %v1655, %v1956
        %v1958 = vand.u32 %v1957, 4294901760
        %1959 = vmatpush.msra.mxu0 %v1958
        %v1960 = vand.u32 %v1654, 4294901760
        %v1961 = vsub.f32 %v1654, %v1960
        %v1962 = vand.u32 %v1961, 4294901760
        %1963 = vmatpush.msra.mxu0 %v1962
        %v1964 = vand.u32 %v1653, 4294901760
        %v1965 = vsub.f32 %v1653, %v1964
        %v1966 = vand.u32 %v1965, 4294901760
        %1967 = vmatpush.msra.mxu0 %v1966
        %v1968 = vand.u32 %v1651, 4294901760
        %1969 = vmatmul.f32.gmra.mxu0 %v1968
        %v1970 = vpop.f32.mrf.mxu0
        %v1971 = vadd.f32 %v1902, %v1970
        %1972 = vdwg.mxu0
        %v1973 = vand.u32 %v1668, 4294901760
        %1974 = vmatpush.msra.mxu0 %v1973
        %v1975 = vand.u32 %v1667, 4294901760
        %1976 = vmatpush.msra.mxu0 %v1975
        %v1977 = vand.u32 %v1666, 4294901760
        %1978 = vmatpush.msra.mxu0 %v1977
        %v1979 = vand.u32 %v1665, 4294901760
        %1980 = vmatpush.msra.mxu0 %v1979
        %v1981 = vand.u32 %v1664, 4294901760
        %1982 = vmatpush.msra.mxu0 %v1981
        %v1983 = vand.u32 %v1663, 4294901760
        %1984 = vmatpush.msra.mxu0 %v1983
        %v1985 = vand.u32 %v1662, 4294901760
        %1986 = vmatpush.msra.mxu0 %v1985
        %v1987 = vand.u32 %v1661, 4294901760
        %1988 = vmatpush.msra.mxu0 %v1987
        %v1989 = vand.u32 %v1660, 4294901760
        %1990 = vmatpush.msra.mxu0 %v1989
        %v1991 = vand.u32 %v1659, 4294901760
        %1992 = vmatpush.msra.mxu0 %v1991
        %v1993 = vand.u32 %v1658, 4294901760
        %1994 = vmatpush.msra.mxu0 %v1993
        %v1995 = vand.u32 %v1657, 4294901760
        %1996 = vmatpush.msra.mxu0 %v1995
        %v1997 = vand.u32 %v1656, 4294901760
        %1998 = vmatpush.msra.mxu0 %v1997
        %v1999 = vand.u32 %v1655, 4294901760
        %2000 = vmatpush.msra.mxu0 %v1999
        %v2001 = vand.u32 %v1654, 4294901760
        %2002 = vmatpush.msra.mxu0 %v2001
        %v2003 = vand.u32 %v1653, 4294901760
        %2004 = vmatpush.msra.mxu0 %v2003
        %v2005 = vand.u32 %v1651, 4294901760
        %2006 = vmatmul.f32.gmra.mxu0 %v2005
        %v2007 = vpop.f32.mrf.mxu0
        %v2008 = vadd.f32 %v1971, %v2007
        %2009 = vdwg.mxu0
        %v2010 = vadd.f32 %v1648, %v2008
        %s2011 = sadd.s32 %s199, 5
        %s2012 = scalar_lea.vmem [#allocation2], %s2011
        %v2013 = vld [vmem:[%s2012] sm:$0xff]
        %s2014 = scalar_lea.vmem [#allocation6], 640
        %v2015 = vld [vmem:[%s2014] sm:$0xff]
        %v2016 = vld [vmem:[%s2014 + $0x8] sm:$0xff]
        %v2017 = vld [vmem:[%s2014 + $0x10] sm:$0xff]
        %v2018 = vld [vmem:[%s2014 + $0x18] sm:$0xff]
        %v2019 = vld [vmem:[%s2014 + $0x20] sm:$0xff]
        %v2020 = vld [vmem:[%s2014 + $0x28] sm:$0xff]
        %v2021 = vld [vmem:[%s2014 + $0x30] sm:$0xff]
        %v2022 = vld [vmem:[%s2014 + $0x38] sm:$0xff]
        %v2023 = vld [vmem:[%s2014 + $0x40] sm:$0xff]
        %v2024 = vld [vmem:[%s2014 + $0x48] sm:$0xff]
        %v2025 = vld [vmem:[%s2014 + $0x50] sm:$0xff]
        %v2026 = vld [vmem:[%s2014 + $0x58] sm:$0xff]
        %v2027 = vld [vmem:[%s2014 + $0x60] sm:$0xff]
        %v2028 = vld [vmem:[%s2014 + $0x68] sm:$0xff]
        %v2029 = vld [vmem:[%s2014 + $0x70] sm:$0xff]
        %v2030 = vld [vmem:[%s2014 + $0x78] sm:$0xff]
        %v2031 = vand.u32 %v2030, 4294901760
        %2032 = vmatpush.msra.mxu0 %v2031
        %v2033 = vand.u32 %v2029, 4294901760
        %2034 = vmatpush.msra.mxu0 %v2033
        %v2035 = vand.u32 %v2028, 4294901760
        %2036 = vmatpush.msra.mxu0 %v2035
        %v2037 = vand.u32 %v2027, 4294901760
        %2038 = vmatpush.msra.mxu0 %v2037
        %v2039 = vand.u32 %v2026, 4294901760
        %2040 = vmatpush.msra.mxu0 %v2039
        %v2041 = vand.u32 %v2025, 4294901760
        %2042 = vmatpush.msra.mxu0 %v2041
        %v2043 = vand.u32 %v2024, 4294901760
        %2044 = vmatpush.msra.mxu0 %v2043
        %v2045 = vand.u32 %v2023, 4294901760
        %2046 = vmatpush.msra.mxu0 %v2045
        %v2047 = vand.u32 %v2022, 4294901760
        %2048 = vmatpush.msra.mxu0 %v2047
        %v2049 = vand.u32 %v2021, 4294901760
        %2050 = vmatpush.msra.mxu0 %v2049
        %v2051 = vand.u32 %v2020, 4294901760
        %2052 = vmatpush.msra.mxu0 %v2051
        %v2053 = vand.u32 %v2019, 4294901760
        %2054 = vmatpush.msra.mxu0 %v2053
        %v2055 = vand.u32 %v2018, 4294901760
        %2056 = vmatpush.msra.mxu0 %v2055
        %v2057 = vand.u32 %v2017, 4294901760
        %2058 = vmatpush.msra.mxu0 %v2057
        %v2059 = vand.u32 %v2016, 4294901760
        %2060 = vmatpush.msra.mxu0 %v2059
        %v2061 = vand.u32 %v2015, 4294901760
        %2062 = vmatpush.msra.mxu0 %v2061
        %v2063 = vand.u32 %v2013, 4294901760
        %v2064 = vsub.f32 %v2013, %v2063
        %v2065 = vand.u32 %v2064, 4294901760
        %v2066 = vsub.f32 %v2064, %v2065
        %v2067 = vand.u32 %v2066, 4294901760
        %2068 = vmatmul.f32.gmra.mxu0 %v2067
        %v2069 = vpop.f32.mrf.mxu0
        %v2070 = vadd.f32 0.0, %v2069
        %2071 = vdwg.mxu0
        %v2072 = vand.u32 %v2030, 4294901760
        %v2073 = vsub.f32 %v2030, %v2072
        %v2074 = vand.u32 %v2073, 4294901760
        %v2075 = vsub.f32 %v2073, %v2074
        %v2076 = vand.u32 %v2075, 4294901760
        %2077 = vmatpush.msra.mxu0 %v2076
        %v2078 = vand.u32 %v2029, 4294901760
        %v2079 = vsub.f32 %v2029, %v2078
        %v2080 = vand.u32 %v2079, 4294901760
        %v2081 = vsub.f32 %v2079, %v2080
        %v2082 = vand.u32 %v2081, 4294901760
        %2083 = vmatpush.msra.mxu0 %v2082
        %v2084 = vand.u32 %v2028, 4294901760
        %v2085 = vsub.f32 %v2028, %v2084
        %v2086 = vand.u32 %v2085, 4294901760
        %v2087 = vsub.f32 %v2085, %v2086
        %v2088 = vand.u32 %v2087, 4294901760
        %2089 = vmatpush.msra.mxu0 %v2088
        %v2090 = vand.u32 %v2027, 4294901760
        %v2091 = vsub.f32 %v2027, %v2090
        %v2092 = vand.u32 %v2091, 4294901760
        %v2093 = vsub.f32 %v2091, %v2092
        %v2094 = vand.u32 %v2093, 4294901760
        %2095 = vmatpush.msra.mxu0 %v2094
        %v2096 = vand.u32 %v2026, 4294901760
        %v2097 = vsub.f32 %v2026, %v2096
        %v2098 = vand.u32 %v2097, 4294901760
        %v2099 = vsub.f32 %v2097, %v2098
        %v2100 = vand.u32 %v2099, 4294901760
        %2101 = vmatpush.msra.mxu0 %v2100
        %v2102 = vand.u32 %v2025, 4294901760
        %v2103 = vsub.f32 %v2025, %v2102
        %v2104 = vand.u32 %v2103, 4294901760
        %v2105 = vsub.f32 %v2103, %v2104
        %v2106 = vand.u32 %v2105, 4294901760
        %2107 = vmatpush.msra.mxu0 %v2106
        %v2108 = vand.u32 %v2024, 4294901760
        %v2109 = vsub.f32 %v2024, %v2108
        %v2110 = vand.u32 %v2109, 4294901760
        %v2111 = vsub.f32 %v2109, %v2110
        %v2112 = vand.u32 %v2111, 4294901760
        %2113 = vmatpush.msra.mxu0 %v2112
        %v2114 = vand.u32 %v2023, 4294901760
        %v2115 = vsub.f32 %v2023, %v2114
        %v2116 = vand.u32 %v2115, 4294901760
        %v2117 = vsub.f32 %v2115, %v2116
        %v2118 = vand.u32 %v2117, 4294901760
        %2119 = vmatpush.msra.mxu0 %v2118
        %v2120 = vand.u32 %v2022, 4294901760
        %v2121 = vsub.f32 %v2022, %v2120
        %v2122 = vand.u32 %v2121, 4294901760
        %v2123 = vsub.f32 %v2121, %v2122
        %v2124 = vand.u32 %v2123, 4294901760
        %2125 = vmatpush.msra.mxu0 %v2124
        %v2126 = vand.u32 %v2021, 4294901760
        %v2127 = vsub.f32 %v2021, %v2126
        %v2128 = vand.u32 %v2127, 4294901760
        %v2129 = vsub.f32 %v2127, %v2128
        %v2130 = vand.u32 %v2129, 4294901760
        %2131 = vmatpush.msra.mxu0 %v2130
        %v2132 = vand.u32 %v2020, 4294901760
        %v2133 = vsub.f32 %v2020, %v2132
        %v2134 = vand.u32 %v2133, 4294901760
        %v2135 = vsub.f32 %v2133, %v2134
        %v2136 = vand.u32 %v2135, 4294901760
        %2137 = vmatpush.msra.mxu0 %v2136
        %v2138 = vand.u32 %v2019, 4294901760
        %v2139 = vsub.f32 %v2019, %v2138
        %v2140 = vand.u32 %v2139, 4294901760
        %v2141 = vsub.f32 %v2139, %v2140
        %v2142 = vand.u32 %v2141, 4294901760
        %2143 = vmatpush.msra.mxu0 %v2142
        %v2144 = vand.u32 %v2018, 4294901760
        %v2145 = vsub.f32 %v2018, %v2144
        %v2146 = vand.u32 %v2145, 4294901760
        %v2147 = vsub.f32 %v2145, %v2146
        %v2148 = vand.u32 %v2147, 4294901760
        %2149 = vmatpush.msra.mxu0 %v2148
        %v2150 = vand.u32 %v2017, 4294901760
        %v2151 = vsub.f32 %v2017, %v2150
        %v2152 = vand.u32 %v2151, 4294901760
        %v2153 = vsub.f32 %v2151, %v2152
        %v2154 = vand.u32 %v2153, 4294901760
        %2155 = vmatpush.msra.mxu0 %v2154
        %v2156 = vand.u32 %v2016, 4294901760
        %v2157 = vsub.f32 %v2016, %v2156
        %v2158 = vand.u32 %v2157, 4294901760
        %v2159 = vsub.f32 %v2157, %v2158
        %v2160 = vand.u32 %v2159, 4294901760
        %2161 = vmatpush.msra.mxu0 %v2160
        %v2162 = vand.u32 %v2015, 4294901760
        %v2163 = vsub.f32 %v2015, %v2162
        %v2164 = vand.u32 %v2163, 4294901760
        %v2165 = vsub.f32 %v2163, %v2164
        %v2166 = vand.u32 %v2165, 4294901760
        %2167 = vmatpush.msra.mxu0 %v2166
        %v2168 = vand.u32 %v2013, 4294901760
        %2169 = vmatmul.f32.gmra.mxu0 %v2168
        %v2170 = vpop.f32.mrf.mxu0
        %v2171 = vadd.f32 %v2070, %v2170
        %2172 = vdwg.mxu0
        %v2173 = vand.u32 %v2030, 4294901760
        %v2174 = vsub.f32 %v2030, %v2173
        %2175 = vmatpush.msra.mxu0 %v2174
        %v2176 = vand.u32 %v2029, 4294901760
        %v2177 = vsub.f32 %v2029, %v2176
        %2178 = vmatpush.msra.mxu0 %v2177
        %v2179 = vand.u32 %v2028, 4294901760
        %v2180 = vsub.f32 %v2028, %v2179
        %2181 = vmatpush.msra.mxu0 %v2180
        %v2182 = vand.u32 %v2027, 4294901760
        %v2183 = vsub.f32 %v2027, %v2182
        %2184 = vmatpush.msra.mxu0 %v2183
        %v2185 = vand.u32 %v2026, 4294901760
        %v2186 = vsub.f32 %v2026, %v2185
        %2187 = vmatpush.msra.mxu0 %v2186
        %v2188 = vand.u32 %v2025, 4294901760
        %v2189 = vsub.f32 %v2025, %v2188
        %2190 = vmatpush.msra.mxu0 %v2189
        %v2191 = vand.u32 %v2024, 4294901760
        %v2192 = vsub.f32 %v2024, %v2191
        %2193 = vmatpush.msra.mxu0 %v2192
        %v2194 = vand.u32 %v2023, 4294901760
        %v2195 = vsub.f32 %v2023, %v2194
        %2196 = vmatpush.msra.mxu0 %v2195
        %v2197 = vand.u32 %v2022, 4294901760
        %v2198 = vsub.f32 %v2022, %v2197
        %2199 = vmatpush.msra.mxu0 %v2198
        %v2200 = vand.u32 %v2021, 4294901760
        %v2201 = vsub.f32 %v2021, %v2200
        %2202 = vmatpush.msra.mxu0 %v2201
        %v2203 = vand.u32 %v2020, 4294901760
        %v2204 = vsub.f32 %v2020, %v2203
        %2205 = vmatpush.msra.mxu0 %v2204
        %v2206 = vand.u32 %v2019, 4294901760
        %v2207 = vsub.f32 %v2019, %v2206
        %2208 = vmatpush.msra.mxu0 %v2207
        %v2209 = vand.u32 %v2018, 4294901760
        %v2210 = vsub.f32 %v2018, %v2209
        %2211 = vmatpush.msra.mxu0 %v2210
        %v2212 = vand.u32 %v2017, 4294901760
        %v2213 = vsub.f32 %v2017, %v2212
        %2214 = vmatpush.msra.mxu0 %v2213
        %v2215 = vand.u32 %v2016, 4294901760
        %v2216 = vsub.f32 %v2016, %v2215
        %2217 = vmatpush.msra.mxu0 %v2216
        %v2218 = vand.u32 %v2015, 4294901760
        %v2219 = vsub.f32 %v2015, %v2218
        %2220 = vmatpush.msra.mxu0 %v2219
        %v2221 = vand.u32 %v2013, 4294901760
        %v2222 = vsub.f32 %v2013, %v2221
        %2223 = vmatmul.f32.gmra.mxu0 %v2222
        %v2224 = vpop.f32.mrf.mxu0
        %v2225 = vadd.f32 %v2171, %v2224
        %2226 = vdwg.mxu0
        %v2227 = vand.u32 %v2030, 4294901760
        %2228 = vmatpush.msra.mxu0 %v2227
        %v2229 = vand.u32 %v2029, 4294901760
        %2230 = vmatpush.msra.mxu0 %v2229
        %v2231 = vand.u32 %v2028, 4294901760
        %2232 = vmatpush.msra.mxu0 %v2231
        %v2233 = vand.u32 %v2027, 4294901760
        %2234 = vmatpush.msra.mxu0 %v2233
        %v2235 = vand.u32 %v2026, 4294901760
        %2236 = vmatpush.msra.mxu0 %v2235
        %v2237 = vand.u32 %v2025, 4294901760
        %2238 = vmatpush.msra.mxu0 %v2237
        %v2239 = vand.u32 %v2024, 4294901760
        %2240 = vmatpush.msra.mxu0 %v2239
        %v2241 = vand.u32 %v2023, 4294901760
        %2242 = vmatpush.msra.mxu0 %v2241
        %v2243 = vand.u32 %v2022, 4294901760
        %2244 = vmatpush.msra.mxu0 %v2243
        %v2245 = vand.u32 %v2021, 4294901760
        %2246 = vmatpush.msra.mxu0 %v2245
        %v2247 = vand.u32 %v2020, 4294901760
        %2248 = vmatpush.msra.mxu0 %v2247
        %v2249 = vand.u32 %v2019, 4294901760
        %2250 = vmatpush.msra.mxu0 %v2249
        %v2251 = vand.u32 %v2018, 4294901760
        %2252 = vmatpush.msra.mxu0 %v2251
        %v2253 = vand.u32 %v2017, 4294901760
        %2254 = vmatpush.msra.mxu0 %v2253
        %v2255 = vand.u32 %v2016, 4294901760
        %2256 = vmatpush.msra.mxu0 %v2255
        %v2257 = vand.u32 %v2015, 4294901760
        %2258 = vmatpush.msra.mxu0 %v2257
        %v2259 = vand.u32 %v2013, 4294901760
        %v2260 = vsub.f32 %v2013, %v2259
        %v2261 = vand.u32 %v2260, 4294901760
        %2262 = vmatmul.f32.gmra.mxu0 %v2261
        %v2263 = vpop.f32.mrf.mxu0
        %v2264 = vadd.f32 %v2225, %v2263
        %2265 = vdwg.mxu0
        %v2266 = vand.u32 %v2030, 4294901760
        %v2267 = vsub.f32 %v2030, %v2266
        %v2268 = vand.u32 %v2267, 4294901760
        %2269 = vmatpush.msra.mxu0 %v2268
        %v2270 = vand.u32 %v2029, 4294901760
        %v2271 = vsub.f32 %v2029, %v2270
        %v2272 = vand.u32 %v2271, 4294901760
        %2273 = vmatpush.msra.mxu0 %v2272
        %v2274 = vand.u32 %v2028, 4294901760
        %v2275 = vsub.f32 %v2028, %v2274
        %v2276 = vand.u32 %v2275, 4294901760
        %2277 = vmatpush.msra.mxu0 %v2276
        %v2278 = vand.u32 %v2027, 4294901760
        %v2279 = vsub.f32 %v2027, %v2278
        %v2280 = vand.u32 %v2279, 4294901760
        %2281 = vmatpush.msra.mxu0 %v2280
        %v2282 = vand.u32 %v2026, 4294901760
        %v2283 = vsub.f32 %v2026, %v2282
        %v2284 = vand.u32 %v2283, 4294901760
        %2285 = vmatpush.msra.mxu0 %v2284
        %v2286 = vand.u32 %v2025, 4294901760
        %v2287 = vsub.f32 %v2025, %v2286
        %v2288 = vand.u32 %v2287, 4294901760
        %2289 = vmatpush.msra.mxu0 %v2288
        %v2290 = vand.u32 %v2024, 4294901760
        %v2291 = vsub.f32 %v2024, %v2290
        %v2292 = vand.u32 %v2291, 4294901760
        %2293 = vmatpush.msra.mxu0 %v2292
        %v2294 = vand.u32 %v2023, 4294901760
        %v2295 = vsub.f32 %v2023, %v2294
        %v2296 = vand.u32 %v2295, 4294901760
        %2297 = vmatpush.msra.mxu0 %v2296
        %v2298 = vand.u32 %v2022, 4294901760
        %v2299 = vsub.f32 %v2022, %v2298
        %v2300 = vand.u32 %v2299, 4294901760
        %2301 = vmatpush.msra.mxu0 %v2300
        %v2302 = vand.u32 %v2021, 4294901760
        %v2303 = vsub.f32 %v2021, %v2302
        %v2304 = vand.u32 %v2303, 4294901760
        %2305 = vmatpush.msra.mxu0 %v2304
        %v2306 = vand.u32 %v2020, 4294901760
        %v2307 = vsub.f32 %v2020, %v2306
        %v2308 = vand.u32 %v2307, 4294901760
        %2309 = vmatpush.msra.mxu0 %v2308
        %v2310 = vand.u32 %v2019, 4294901760
        %v2311 = vsub.f32 %v2019, %v2310
        %v2312 = vand.u32 %v2311, 4294901760
        %2313 = vmatpush.msra.mxu0 %v2312
        %v2314 = vand.u32 %v2018, 4294901760
        %v2315 = vsub.f32 %v2018, %v2314
        %v2316 = vand.u32 %v2315, 4294901760
        %2317 = vmatpush.msra.mxu0 %v2316
        %v2318 = vand.u32 %v2017, 4294901760
        %v2319 = vsub.f32 %v2017, %v2318
        %v2320 = vand.u32 %v2319, 4294901760
        %2321 = vmatpush.msra.mxu0 %v2320
        %v2322 = vand.u32 %v2016, 4294901760
        %v2323 = vsub.f32 %v2016, %v2322
        %v2324 = vand.u32 %v2323, 4294901760
        %2325 = vmatpush.msra.mxu0 %v2324
        %v2326 = vand.u32 %v2015, 4294901760
        %v2327 = vsub.f32 %v2015, %v2326
        %v2328 = vand.u32 %v2327, 4294901760
        %2329 = vmatpush.msra.mxu0 %v2328
        %v2330 = vand.u32 %v2013, 4294901760
        %2331 = vmatmul.f32.gmra.mxu0 %v2330
        %v2332 = vpop.f32.mrf.mxu0
        %v2333 = vadd.f32 %v2264, %v2332
        %2334 = vdwg.mxu0
        %v2335 = vand.u32 %v2030, 4294901760
        %2336 = vmatpush.msra.mxu0 %v2335
        %v2337 = vand.u32 %v2029, 4294901760
        %2338 = vmatpush.msra.mxu0 %v2337
        %v2339 = vand.u32 %v2028, 4294901760
        %2340 = vmatpush.msra.mxu0 %v2339
        %v2341 = vand.u32 %v2027, 4294901760
        %2342 = vmatpush.msra.mxu0 %v2341
        %v2343 = vand.u32 %v2026, 4294901760
        %2344 = vmatpush.msra.mxu0 %v2343
        %v2345 = vand.u32 %v2025, 4294901760
        %2346 = vmatpush.msra.mxu0 %v2345
        %v2347 = vand.u32 %v2024, 4294901760
        %2348 = vmatpush.msra.mxu0 %v2347
        %v2349 = vand.u32 %v2023, 4294901760
        %2350 = vmatpush.msra.mxu0 %v2349
        %v2351 = vand.u32 %v2022, 4294901760
        %2352 = vmatpush.msra.mxu0 %v2351
        %v2353 = vand.u32 %v2021, 4294901760
        %2354 = vmatpush.msra.mxu0 %v2353
        %v2355 = vand.u32 %v2020, 4294901760
        %2356 = vmatpush.msra.mxu0 %v2355
        %v2357 = vand.u32 %v2019, 4294901760
        %2358 = vmatpush.msra.mxu0 %v2357
        %v2359 = vand.u32 %v2018, 4294901760
        %2360 = vmatpush.msra.mxu0 %v2359
        %v2361 = vand.u32 %v2017, 4294901760
        %2362 = vmatpush.msra.mxu0 %v2361
        %v2363 = vand.u32 %v2016, 4294901760
        %2364 = vmatpush.msra.mxu0 %v2363
        %v2365 = vand.u32 %v2015, 4294901760
        %2366 = vmatpush.msra.mxu0 %v2365
        %v2367 = vand.u32 %v2013, 4294901760
        %2368 = vmatmul.f32.gmra.mxu0 %v2367
        %v2369 = vpop.f32.mrf.mxu0
        %v2370 = vadd.f32 %v2333, %v2369
        %2371 = vdwg.mxu0
        %v2372 = vadd.f32 %v2010, %v2370
        %s2373 = sadd.s32 %s199, 6
        %s2374 = scalar_lea.vmem [#allocation2], %s2373
        %v2375 = vld [vmem:[%s2374] sm:$0xff]
        %s2376 = scalar_lea.vmem [#allocation6], 768
        %v2377 = vld [vmem:[%s2376] sm:$0xff]
        %v2378 = vld [vmem:[%s2376 + $0x8] sm:$0xff]
        %v2379 = vld [vmem:[%s2376 + $0x10] sm:$0xff]
        %v2380 = vld [vmem:[%s2376 + $0x18] sm:$0xff]
        %v2381 = vld [vmem:[%s2376 + $0x20] sm:$0xff]
        %v2382 = vld [vmem:[%s2376 + $0x28] sm:$0xff]
        %v2383 = vld [vmem:[%s2376 + $0x30] sm:$0xff]
        %v2384 = vld [vmem:[%s2376 + $0x38] sm:$0xff]
        %v2385 = vld [vmem:[%s2376 + $0x40] sm:$0xff]
        %v2386 = vld [vmem:[%s2376 + $0x48] sm:$0xff]
        %v2387 = vld [vmem:[%s2376 + $0x50] sm:$0xff]
        %v2388 = vld [vmem:[%s2376 + $0x58] sm:$0xff]
        %v2389 = vld [vmem:[%s2376 + $0x60] sm:$0xff]
        %v2390 = vld [vmem:[%s2376 + $0x68] sm:$0xff]
        %v2391 = vld [vmem:[%s2376 + $0x70] sm:$0xff]
        %v2392 = vld [vmem:[%s2376 + $0x78] sm:$0xff]
        %v2393 = vand.u32 %v2392, 4294901760
        %2394 = vmatpush.msra.mxu0 %v2393
        %v2395 = vand.u32 %v2391, 4294901760
        %2396 = vmatpush.msra.mxu0 %v2395
        %v2397 = vand.u32 %v2390, 4294901760
        %2398 = vmatpush.msra.mxu0 %v2397
        %v2399 = vand.u32 %v2389, 4294901760
        %2400 = vmatpush.msra.mxu0 %v2399
        %v2401 = vand.u32 %v2388, 4294901760
        %2402 = vmatpush.msra.mxu0 %v2401
        %v2403 = vand.u32 %v2387, 4294901760
        %2404 = vmatpush.msra.mxu0 %v2403
        %v2405 = vand.u32 %v2386, 4294901760
        %2406 = vmatpush.msra.mxu0 %v2405
        %v2407 = vand.u32 %v2385, 4294901760
        %2408 = vmatpush.msra.mxu0 %v2407
        %v2409 = vand.u32 %v2384, 4294901760
        %2410 = vmatpush.msra.mxu0 %v2409
        %v2411 = vand.u32 %v2383, 4294901760
        %2412 = vmatpush.msra.mxu0 %v2411
        %v2413 = vand.u32 %v2382, 4294901760
        %2414 = vmatpush.msra.mxu0 %v2413
        %v2415 = vand.u32 %v2381, 4294901760
        %2416 = vmatpush.msra.mxu0 %v2415
        %v2417 = vand.u32 %v2380, 4294901760
        %2418 = vmatpush.msra.mxu0 %v2417
        %v2419 = vand.u32 %v2379, 4294901760
        %2420 = vmatpush.msra.mxu0 %v2419
        %v2421 = vand.u32 %v2378, 4294901760
        %2422 = vmatpush.msra.mxu0 %v2421
        %v2423 = vand.u32 %v2377, 4294901760
        %2424 = vmatpush.msra.mxu0 %v2423
        %v2425 = vand.u32 %v2375, 4294901760
        %v2426 = vsub.f32 %v2375, %v2425
        %v2427 = vand.u32 %v2426, 4294901760
        %v2428 = vsub.f32 %v2426, %v2427
        %v2429 = vand.u32 %v2428, 4294901760
        %2430 = vmatmul.f32.gmra.mxu0 %v2429
        %v2431 = vpop.f32.mrf.mxu0
        %v2432 = vadd.f32 0.0, %v2431
        %2433 = vdwg.mxu0
        %v2434 = vand.u32 %v2392, 4294901760
        %v2435 = vsub.f32 %v2392, %v2434
        %v2436 = vand.u32 %v2435, 4294901760
        %v2437 = vsub.f32 %v2435, %v2436
        %v2438 = vand.u32 %v2437, 4294901760
        %2439 = vmatpush.msra.mxu0 %v2438
        %v2440 = vand.u32 %v2391, 4294901760
        %v2441 = vsub.f32 %v2391, %v2440
        %v2442 = vand.u32 %v2441, 4294901760
        %v2443 = vsub.f32 %v2441, %v2442
        %v2444 = vand.u32 %v2443, 4294901760
        %2445 = vmatpush.msra.mxu0 %v2444
        %v2446 = vand.u32 %v2390, 4294901760
        %v2447 = vsub.f32 %v2390, %v2446
        %v2448 = vand.u32 %v2447, 4294901760
        %v2449 = vsub.f32 %v2447, %v2448
        %v2450 = vand.u32 %v2449, 4294901760
        %2451 = vmatpush.msra.mxu0 %v2450
        %v2452 = vand.u32 %v2389, 4294901760
        %v2453 = vsub.f32 %v2389, %v2452
        %v2454 = vand.u32 %v2453, 4294901760
        %v2455 = vsub.f32 %v2453, %v2454
        %v2456 = vand.u32 %v2455, 4294901760
        %2457 = vmatpush.msra.mxu0 %v2456
        %v2458 = vand.u32 %v2388, 4294901760
        %v2459 = vsub.f32 %v2388, %v2458
        %v2460 = vand.u32 %v2459, 4294901760
        %v2461 = vsub.f32 %v2459, %v2460
        %v2462 = vand.u32 %v2461, 4294901760
        %2463 = vmatpush.msra.mxu0 %v2462
        %v2464 = vand.u32 %v2387, 4294901760
        %v2465 = vsub.f32 %v2387, %v2464
        %v2466 = vand.u32 %v2465, 4294901760
        %v2467 = vsub.f32 %v2465, %v2466
        %v2468 = vand.u32 %v2467, 4294901760
        %2469 = vmatpush.msra.mxu0 %v2468
        %v2470 = vand.u32 %v2386, 4294901760
        %v2471 = vsub.f32 %v2386, %v2470
        %v2472 = vand.u32 %v2471, 4294901760
        %v2473 = vsub.f32 %v2471, %v2472
        %v2474 = vand.u32 %v2473, 4294901760
        %2475 = vmatpush.msra.mxu0 %v2474
        %v2476 = vand.u32 %v2385, 4294901760
        %v2477 = vsub.f32 %v2385, %v2476
        %v2478 = vand.u32 %v2477, 4294901760
        %v2479 = vsub.f32 %v2477, %v2478
        %v2480 = vand.u32 %v2479, 4294901760
        %2481 = vmatpush.msra.mxu0 %v2480
        %v2482 = vand.u32 %v2384, 4294901760
        %v2483 = vsub.f32 %v2384, %v2482
        %v2484 = vand.u32 %v2483, 4294901760
        %v2485 = vsub.f32 %v2483, %v2484
        %v2486 = vand.u32 %v2485, 4294901760
        %2487 = vmatpush.msra.mxu0 %v2486
        %v2488 = vand.u32 %v2383, 4294901760
        %v2489 = vsub.f32 %v2383, %v2488
        %v2490 = vand.u32 %v2489, 4294901760
        %v2491 = vsub.f32 %v2489, %v2490
        %v2492 = vand.u32 %v2491, 4294901760
        %2493 = vmatpush.msra.mxu0 %v2492
        %v2494 = vand.u32 %v2382, 4294901760
        %v2495 = vsub.f32 %v2382, %v2494
        %v2496 = vand.u32 %v2495, 4294901760
        %v2497 = vsub.f32 %v2495, %v2496
        %v2498 = vand.u32 %v2497, 4294901760
        %2499 = vmatpush.msra.mxu0 %v2498
        %v2500 = vand.u32 %v2381, 4294901760
        %v2501 = vsub.f32 %v2381, %v2500
        %v2502 = vand.u32 %v2501, 4294901760
        %v2503 = vsub.f32 %v2501, %v2502
        %v2504 = vand.u32 %v2503, 4294901760
        %2505 = vmatpush.msra.mxu0 %v2504
        %v2506 = vand.u32 %v2380, 4294901760
        %v2507 = vsub.f32 %v2380, %v2506
        %v2508 = vand.u32 %v2507, 4294901760
        %v2509 = vsub.f32 %v2507, %v2508
        %v2510 = vand.u32 %v2509, 4294901760
        %2511 = vmatpush.msra.mxu0 %v2510
        %v2512 = vand.u32 %v2379, 4294901760
        %v2513 = vsub.f32 %v2379, %v2512
        %v2514 = vand.u32 %v2513, 4294901760
        %v2515 = vsub.f32 %v2513, %v2514
        %v2516 = vand.u32 %v2515, 4294901760
        %2517 = vmatpush.msra.mxu0 %v2516
        %v2518 = vand.u32 %v2378, 4294901760
        %v2519 = vsub.f32 %v2378, %v2518
        %v2520 = vand.u32 %v2519, 4294901760
        %v2521 = vsub.f32 %v2519, %v2520
        %v2522 = vand.u32 %v2521, 4294901760
        %2523 = vmatpush.msra.mxu0 %v2522
        %v2524 = vand.u32 %v2377, 4294901760
        %v2525 = vsub.f32 %v2377, %v2524
        %v2526 = vand.u32 %v2525, 4294901760
        %v2527 = vsub.f32 %v2525, %v2526
        %v2528 = vand.u32 %v2527, 4294901760
        %2529 = vmatpush.msra.mxu0 %v2528
        %v2530 = vand.u32 %v2375, 4294901760
        %2531 = vmatmul.f32.gmra.mxu0 %v2530
        %v2532 = vpop.f32.mrf.mxu0
        %v2533 = vadd.f32 %v2432, %v2532
        %2534 = vdwg.mxu0
        %v2535 = vand.u32 %v2392, 4294901760
        %v2536 = vsub.f32 %v2392, %v2535
        %2537 = vmatpush.msra.mxu0 %v2536
        %v2538 = vand.u32 %v2391, 4294901760
        %v2539 = vsub.f32 %v2391, %v2538
        %2540 = vmatpush.msra.mxu0 %v2539
        %v2541 = vand.u32 %v2390, 4294901760
        %v2542 = vsub.f32 %v2390, %v2541
        %2543 = vmatpush.msra.mxu0 %v2542
        %v2544 = vand.u32 %v2389, 4294901760
        %v2545 = vsub.f32 %v2389, %v2544
        %2546 = vmatpush.msra.mxu0 %v2545
        %v2547 = vand.u32 %v2388, 4294901760
        %v2548 = vsub.f32 %v2388, %v2547
        %2549 = vmatpush.msra.mxu0 %v2548
        %v2550 = vand.u32 %v2387, 4294901760
        %v2551 = vsub.f32 %v2387, %v2550
        %2552 = vmatpush.msra.mxu0 %v2551
        %v2553 = vand.u32 %v2386, 4294901760
        %v2554 = vsub.f32 %v2386, %v2553
        %2555 = vmatpush.msra.mxu0 %v2554
        %v2556 = vand.u32 %v2385, 4294901760
        %v2557 = vsub.f32 %v2385, %v2556
        %2558 = vmatpush.msra.mxu0 %v2557
        %v2559 = vand.u32 %v2384, 4294901760
        %v2560 = vsub.f32 %v2384, %v2559
        %2561 = vmatpush.msra.mxu0 %v2560
        %v2562 = vand.u32 %v2383, 4294901760
        %v2563 = vsub.f32 %v2383, %v2562
        %2564 = vmatpush.msra.mxu0 %v2563
        %v2565 = vand.u32 %v2382, 4294901760
        %v2566 = vsub.f32 %v2382, %v2565
        %2567 = vmatpush.msra.mxu0 %v2566
        %v2568 = vand.u32 %v2381, 4294901760
        %v2569 = vsub.f32 %v2381, %v2568
        %2570 = vmatpush.msra.mxu0 %v2569
        %v2571 = vand.u32 %v2380, 4294901760
        %v2572 = vsub.f32 %v2380, %v2571
        %2573 = vmatpush.msra.mxu0 %v2572
        %v2574 = vand.u32 %v2379, 4294901760
        %v2575 = vsub.f32 %v2379, %v2574
        %2576 = vmatpush.msra.mxu0 %v2575
        %v2577 = vand.u32 %v2378, 4294901760
        %v2578 = vsub.f32 %v2378, %v2577
        %2579 = vmatpush.msra.mxu0 %v2578
        %v2580 = vand.u32 %v2377, 4294901760
        %v2581 = vsub.f32 %v2377, %v2580
        %2582 = vmatpush.msra.mxu0 %v2581
        %v2583 = vand.u32 %v2375, 4294901760
        %v2584 = vsub.f32 %v2375, %v2583
        %2585 = vmatmul.f32.gmra.mxu0 %v2584
        %v2586 = vpop.f32.mrf.mxu0
        %v2587 = vadd.f32 %v2533, %v2586
        %2588 = vdwg.mxu0
        %v2589 = vand.u32 %v2392, 4294901760
        %2590 = vmatpush.msra.mxu0 %v2589
        %v2591 = vand.u32 %v2391, 4294901760
        %2592 = vmatpush.msra.mxu0 %v2591
        %v2593 = vand.u32 %v2390, 4294901760
        %2594 = vmatpush.msra.mxu0 %v2593
        %v2595 = vand.u32 %v2389, 4294901760
        %2596 = vmatpush.msra.mxu0 %v2595
        %v2597 = vand.u32 %v2388, 4294901760
        %2598 = vmatpush.msra.mxu0 %v2597
        %v2599 = vand.u32 %v2387, 4294901760
        %2600 = vmatpush.msra.mxu0 %v2599
        %v2601 = vand.u32 %v2386, 4294901760
        %2602 = vmatpush.msra.mxu0 %v2601
        %v2603 = vand.u32 %v2385, 4294901760
        %2604 = vmatpush.msra.mxu0 %v2603
        %v2605 = vand.u32 %v2384, 4294901760
        %2606 = vmatpush.msra.mxu0 %v2605
        %v2607 = vand.u32 %v2383, 4294901760
        %2608 = vmatpush.msra.mxu0 %v2607
        %v2609 = vand.u32 %v2382, 4294901760
        %2610 = vmatpush.msra.mxu0 %v2609
        %v2611 = vand.u32 %v2381, 4294901760
        %2612 = vmatpush.msra.mxu0 %v2611
        %v2613 = vand.u32 %v2380, 4294901760
        %2614 = vmatpush.msra.mxu0 %v2613
        %v2615 = vand.u32 %v2379, 4294901760
        %2616 = vmatpush.msra.mxu0 %v2615
        %v2617 = vand.u32 %v2378, 4294901760
        %2618 = vmatpush.msra.mxu0 %v2617
        %v2619 = vand.u32 %v2377, 4294901760
        %2620 = vmatpush.msra.mxu0 %v2619
        %v2621 = vand.u32 %v2375, 4294901760
        %v2622 = vsub.f32 %v2375, %v2621
        %v2623 = vand.u32 %v2622, 4294901760
        %2624 = vmatmul.f32.gmra.mxu0 %v2623
        %v2625 = vpop.f32.mrf.mxu0
        %v2626 = vadd.f32 %v2587, %v2625
        %2627 = vdwg.mxu0
        %v2628 = vand.u32 %v2392, 4294901760
        %v2629 = vsub.f32 %v2392, %v2628
        %v2630 = vand.u32 %v2629, 4294901760
        %2631 = vmatpush.msra.mxu0 %v2630
        %v2632 = vand.u32 %v2391, 4294901760
        %v2633 = vsub.f32 %v2391, %v2632
        %v2634 = vand.u32 %v2633, 4294901760
        %2635 = vmatpush.msra.mxu0 %v2634
        %v2636 = vand.u32 %v2390, 4294901760
        %v2637 = vsub.f32 %v2390, %v2636
        %v2638 = vand.u32 %v2637, 4294901760
        %2639 = vmatpush.msra.mxu0 %v2638
        %v2640 = vand.u32 %v2389, 4294901760
        %v2641 = vsub.f32 %v2389, %v2640
        %v2642 = vand.u32 %v2641, 4294901760
        %2643 = vmatpush.msra.mxu0 %v2642
        %v2644 = vand.u32 %v2388, 4294901760
        %v2645 = vsub.f32 %v2388, %v2644
        %v2646 = vand.u32 %v2645, 4294901760
        %2647 = vmatpush.msra.mxu0 %v2646
        %v2648 = vand.u32 %v2387, 4294901760
        %v2649 = vsub.f32 %v2387, %v2648
        %v2650 = vand.u32 %v2649, 4294901760
        %2651 = vmatpush.msra.mxu0 %v2650
        %v2652 = vand.u32 %v2386, 4294901760
        %v2653 = vsub.f32 %v2386, %v2652
        %v2654 = vand.u32 %v2653, 4294901760
        %2655 = vmatpush.msra.mxu0 %v2654
        %v2656 = vand.u32 %v2385, 4294901760
        %v2657 = vsub.f32 %v2385, %v2656
        %v2658 = vand.u32 %v2657, 4294901760
        %2659 = vmatpush.msra.mxu0 %v2658
        %v2660 = vand.u32 %v2384, 4294901760
        %v2661 = vsub.f32 %v2384, %v2660
        %v2662 = vand.u32 %v2661, 4294901760
        %2663 = vmatpush.msra.mxu0 %v2662
        %v2664 = vand.u32 %v2383, 4294901760
        %v2665 = vsub.f32 %v2383, %v2664
        %v2666 = vand.u32 %v2665, 4294901760
        %2667 = vmatpush.msra.mxu0 %v2666
        %v2668 = vand.u32 %v2382, 4294901760
        %v2669 = vsub.f32 %v2382, %v2668
        %v2670 = vand.u32 %v2669, 4294901760
        %2671 = vmatpush.msra.mxu0 %v2670
        %v2672 = vand.u32 %v2381, 4294901760
        %v2673 = vsub.f32 %v2381, %v2672
        %v2674 = vand.u32 %v2673, 4294901760
        %2675 = vmatpush.msra.mxu0 %v2674
        %v2676 = vand.u32 %v2380, 4294901760
        %v2677 = vsub.f32 %v2380, %v2676
        %v2678 = vand.u32 %v2677, 4294901760
        %2679 = vmatpush.msra.mxu0 %v2678
        %v2680 = vand.u32 %v2379, 4294901760
        %v2681 = vsub.f32 %v2379, %v2680
        %v2682 = vand.u32 %v2681, 4294901760
        %2683 = vmatpush.msra.mxu0 %v2682
        %v2684 = vand.u32 %v2378, 4294901760
        %v2685 = vsub.f32 %v2378, %v2684
        %v2686 = vand.u32 %v2685, 4294901760
        %2687 = vmatpush.msra.mxu0 %v2686
        %v2688 = vand.u32 %v2377, 4294901760
        %v2689 = vsub.f32 %v2377, %v2688
        %v2690 = vand.u32 %v2689, 4294901760
        %2691 = vmatpush.msra.mxu0 %v2690
        %v2692 = vand.u32 %v2375, 4294901760
        %2693 = vmatmul.f32.gmra.mxu0 %v2692
        %v2694 = vpop.f32.mrf.mxu0
        %v2695 = vadd.f32 %v2626, %v2694
        %2696 = vdwg.mxu0
        %v2697 = vand.u32 %v2392, 4294901760
        %2698 = vmatpush.msra.mxu0 %v2697
        %v2699 = vand.u32 %v2391, 4294901760
        %2700 = vmatpush.msra.mxu0 %v2699
        %v2701 = vand.u32 %v2390, 4294901760
        %2702 = vmatpush.msra.mxu0 %v2701
        %v2703 = vand.u32 %v2389, 4294901760
        %2704 = vmatpush.msra.mxu0 %v2703
        %v2705 = vand.u32 %v2388, 4294901760
        %2706 = vmatpush.msra.mxu0 %v2705
        %v2707 = vand.u32 %v2387, 4294901760
        %2708 = vmatpush.msra.mxu0 %v2707
        %v2709 = vand.u32 %v2386, 4294901760
        %2710 = vmatpush.msra.mxu0 %v2709
        %v2711 = vand.u32 %v2385, 4294901760
        %2712 = vmatpush.msra.mxu0 %v2711
        %v2713 = vand.u32 %v2384, 4294901760
        %2714 = vmatpush.msra.mxu0 %v2713
        %v2715 = vand.u32 %v2383, 4294901760
        %2716 = vmatpush.msra.mxu0 %v2715
        %v2717 = vand.u32 %v2382, 4294901760
        %2718 = vmatpush.msra.mxu0 %v2717
        %v2719 = vand.u32 %v2381, 4294901760
        %2720 = vmatpush.msra.mxu0 %v2719
        %v2721 = vand.u32 %v2380, 4294901760
        %2722 = vmatpush.msra.mxu0 %v2721
        %v2723 = vand.u32 %v2379, 4294901760
        %2724 = vmatpush.msra.mxu0 %v2723
        %v2725 = vand.u32 %v2378, 4294901760
        %2726 = vmatpush.msra.mxu0 %v2725
        %v2727 = vand.u32 %v2377, 4294901760
        %2728 = vmatpush.msra.mxu0 %v2727
        %v2729 = vand.u32 %v2375, 4294901760
        %2730 = vmatmul.f32.gmra.mxu0 %v2729
        %v2731 = vpop.f32.mrf.mxu0
        %v2732 = vadd.f32 %v2695, %v2731
        %2733 = vdwg.mxu0
        %v2734 = vadd.f32 %v2372, %v2732
        %2735 = vst [vmem:[%s182] sm:$0xff] %v2734
        %s2736 = sand.u32 %s90, 1
        %s2737 = scalar_lea.sflag [#allocation5], %s2736
        %s2738 = sand.u32 %s90, 1
        %s2739 = smul.addr %s2738, 8
        %s2740 = scalar_lea.vmem [#allocation8], %s2739
        // Predicated region
        $region41: #{tpu_custom_call.1} parent=31 // pred_check
          %p2741 = pneg %p100
        $region42: #{tpu_custom_call.1} parent=31 // pred_check_branch
          %2743 = sbr.rel (%p2741) target = $region44
        $region43: #{tpu_custom_call.1} parent=31 // pred_region
          %2745 = vsyncadd %s2737, 0
          %s2746 = smul.addr %s19, 8
          %s2747 = scalar_lea.hbm %s3, %s2746
          %s2749 = sshll.u32 %s2740, 4
          %s2750 = int_to_ptr.vmem [resolvable:$true] %s2749
          %s2751 = sshll.u32 %s2747, 4
          %s2752 = int_to_ptr.hbm [resolvable:$true] %s2751
          %2754 = dma.vmem_to_hbm [thread:$0]  %s2750, 128, %s2752, %s2737
        $region44: #{tpu_custom_call.1} parent=31 // pred_fallthru
          _
      $region32: #{tpu_custom_call.1} parent=5 // pred_fallthru
        _
      %p2755 = scmp.le.s32.totalorder 2, %s14
      // Predicated region
      $region45: #{tpu_custom_call.1} parent=5 // pred_check
        %p2756 = pneg %p2755
      $region46: #{tpu_custom_call.1} parent=5 // pred_check_branch
        %2758 = sbr.rel (%p2756) target = $region48
      $region47: #{tpu_custom_call.1} parent=5 // pred_region
        %s2759 = ssub.s32 %s14, 2
        // Predicated region
        $region49: #{tpu_custom_call.1} parent=47 // pred_check
          %p2760 = pneg %p106
        $region50: #{tpu_custom_call.1} parent=47 // pred_check_branch
          %2762 = sbr.rel (%p2760) target = $region52
        $region51: #{tpu_custom_call.1} parent=47 // pred_region
          %s2763 = sand.u32 %s91, 1
          %s2764 = scalar_lea.sflag [#allocation5], %s2763
          %s2765 = sand.u32 %s91, 1
          %s2766 = smul.addr %s2765, 8
          %s2767 = scalar_lea.vmem [#allocation8], %s2766
          %2769 = dma.done %s2764, 128
        $region52: #{tpu_custom_call.1} parent=47 // pred_fallthru
          _
      $region48: #{tpu_custom_call.1} parent=5 // pred_fallthru
        _
    $region6: #{tpu_custom_call.1} parent=1 // loop_footer
      %s18 = sadd.s32 1, %s14
    $region7: #{tpu_custom_call.1} parent=1 // loop_footer_branch
      %13 = sbr.rel target = $region3
    $region8: #{tpu_custom_call.1} parent=1 // loop_exit
      _
    %2770 = vsyncpa [#allocation4], 1
    %s2771 = scalar_lea.sflag [#allocation4], 1
    %2772 = vsyncpa %s2771, 1
    %2773 = vsyncpa [#allocation7], 1
    %2774 = vsyncpa [#allocation5], 1
    %s2775 = scalar_lea.sflag [#allocation5], 1
    %2776 = vsyncpa %s2775, 1

</llo_original>
